<compile_context>
chip_gen: v5e
topology: v5e:2x2
jax: 0.10.0
libtpu: 0.0.40
codegen_flags: <defaults>
</compile_context>

<pallas_src>
import functools

import jax
import jax.numpy as jnp
from jax.experimental import pallas as pl
from jax.experimental.pallas import tpu as pltpu

LANES = 128  # pad all feature/channel dims to one full lane register


def gcn_kernel(adj_ref, x_ref, w_ref, b_ref, out_ref, *, gb, n, num_classes):
    """One grid step processes gb graphs (gn = gb * n node rows).

    adj_ref : (gn, gn)      block-diagonal normalized adjacency (gb graphs)
    x_ref   : (gn, 128)     node features, zero-padded on lanes
    w_ref   : (6, 128, 128) packed weights (w1, w2, w3, wm, wfc1, wfc2)
    b_ref   : (8, 128)      packed biases  (b1, b2, b3, bfc1, bfc2, 0, 0, 0)
    out_ref : (gb, 128)     log-softmax scores, lane-dense (real classes in [:C])
    """
    f32 = jnp.float32
    gn = gb * n

    adj = adj_ref[...]                                   # (gn, gn)
    h = x_ref[...]                                       # (gn, 128)

    def gcn_layer(h, idx):
        hw = jnp.dot(h, w_ref[idx], preferred_element_type=f32)        # H W
        agg = jnp.dot(adj, hw, preferred_element_type=f32) + b_ref[idx]  # A H W + b
        return jnp.maximum(agg, 0.0)                                    # ReLU

    h = gcn_layer(h, 0)                                  # 64 real lanes
    # TODO(synk): dropout is identity here (training=False / inference mode).
    h = gcn_layer(h, 1)                                  # 32 real lanes
    h = gcn_layer(h, 2)                                  # 16 real lanes

    # ---- AttentionModule (per graph), as 2-D matmuls via membership mats ----
    r = jax.lax.broadcasted_iota(jnp.int32, (gb, gn), 1)
    g = jax.lax.broadcasted_iota(jnp.int32, (gb, gn), 0)
    member = ((r >= g * n) & (r < (g + 1) * n)).astype(f32)      # (gb, gn)
    rt = jax.lax.broadcasted_iota(jnp.int32, (gn, gb), 0)
    gt = jax.lax.broadcasted_iota(jnp.int32, (gn, gb), 1)
    member_t = ((rt >= gt * n) & (rt < (gt + 1) * n)).astype(f32)  # (gn, gb)

    hm = jnp.dot(h, w_ref[3], preferred_element_type=f32)          # (gn, 128)
    gc = jnp.dot(member, hm, preferred_element_type=f32) * (1.0 / n)  # per-graph mean
    tg = jnp.tanh(gc)                                               # (gb, 128)
    tg_rows = jnp.dot(member_t, tg, preferred_element_type=f32)     # broadcast to rows
    logits = jnp.sum(h * tg_rows, axis=-1, keepdims=True)           # (gn, 1)
    sig = jax.nn.sigmoid(logits)
    pooled = jnp.dot(member, h * sig, preferred_element_type=f32)   # (gb, 128)

    # ---- fully connected head ----
    s = jnp.maximum(
        jnp.dot(pooled, w_ref[4], preferred_element_type=f32) + b_ref[3], 0.0)
    s = jnp.dot(s, w_ref[5], preferred_element_type=f32) + b_ref[4]  # (gb, 128)

    # log_softmax over the real class lanes only (padding lanes masked out)
    lane = jax.lax.broadcasted_iota(jnp.int32, s.shape, 1)
    s = jnp.where(lane < num_classes, s, -1e30)
    m = jnp.max(s, axis=1, keepdims=True)
    lse = m + jnp.log(jnp.sum(jnp.exp(s - m), axis=1, keepdims=True))
    out_ref[...] = s - lse


def _pad_w(w):
    r, c = w.shape
    return jnp.zeros((LANES, LANES), jnp.float32).at[:r, :c].set(w)


def _pad_b(b):
    b = b.reshape(-1)
    return jnp.zeros((LANES,), jnp.float32).at[: b.shape[0]].set(b)


def gcn_forward(adj_norm, features, params, num_classes, graphs_per_step=8):
    """adj_norm: (B, N, N) normalized adjacency; features: (B, N, F)."""
    B, N, F = features.shape
    GB = graphs_per_step
    GN = GB * N
    assert GB % 8 == 0 and GN % 8 == 0, "tile sublane alignment"

    B_pad = ((B + GB - 1) // GB) * GB
    T = B_pad // GB

    # --- host-side packing (plain JAX glue) ---
    # lane-pad features, flatten graph-major so each block is (GN, 128)
    x_pad = jnp.zeros((B_pad, N, LANES), jnp.float32).at[:B, :, :F].set(features)
    x_flat = x_pad.reshape(B_pad * N, LANES)

    # pack GB graphs per step into a block-diagonal (GN, GN) adjacency tile
    adj_pad = jnp.zeros((B_pad, N, N), jnp.float32).at[:B].set(adj_norm)
    adj_blk = jnp.einsum(
        "tgnm,gh->tgnhm",
        adj_pad.reshape(T, GB, N, N),
        jnp.eye(GB, dtype=jnp.float32),
    ).reshape(T * GN, GN)

    # pack weights / biases into two lane-padded slabs (4 DMA inputs total)
    w_slab = jnp.stack([_pad_w(params["w1"]), _pad_w(params["w2"]),
                        _pad_w(params["w3"]), _pad_w(params["wm"]),
                        _pad_w(params["wfc1"]), _pad_w(params["wfc2"])])   # (6,128,128)
    zeros = jnp.zeros((LANES,), jnp.float32)
    b_slab = jnp.stack([_pad_b(params["b1"]), _pad_b(params["b2"]),
                        _pad_b(params["b3"]), _pad_b(params["bfc1"]),
                        _pad_b(params["bfc2"]), zeros, zeros, zeros])      # (8,128)

    kernel = functools.partial(gcn_kernel, gb=GB, n=N, num_classes=num_classes)

    # NOTE: for large N the (GN, GN) block-diagonal tile would need row/col
    # tiling over extra grid axes; at N=16 / GB=8 it is exactly one 128x128 tile.
    out = pl.pallas_call(
        kernel,
        grid=(T,),
        in_specs=[
            pl.BlockSpec((GN, GN), lambda i: (i, 0)),             # block-diag adj
            pl.BlockSpec((GN, LANES), lambda i: (i, 0)),          # features
            pl.BlockSpec((6, LANES, LANES), lambda i: (0, 0, 0)), # weight slab
            pl.BlockSpec((8, LANES), lambda i: (0, 0)),           # bias slab
        ],
        out_specs=pl.BlockSpec((GB, LANES), lambda i: (i, 0)),    # lane-dense out
        out_shape=jax.ShapeDtypeStruct((B_pad, LANES), jnp.float32),
        compiler_params=pltpu.CompilerParams(
            dimension_semantics=("parallel",)),
    )(adj_blk, x_flat, w_slab, b_slab)

    return out[:B, :num_classes]


def xavier_uniform(key, shape):
    fan_in, fan_out = shape
    limit = (6.0 / (fan_in + fan_out)) ** 0.5
    return jax.random.uniform(key, shape, jnp.float32, -limit, limit)


def linear_init(key, fan_in, fan_out):
    # mirrors torch.nn.Linear default init bounds (deterministic, not a checkpoint)
    kw, kb = jax.random.split(key)
    bound = 1.0 / (fan_in ** 0.5)
    w = jax.random.uniform(kw, (fan_in, fan_out), jnp.float32, -bound, bound)
    b = jax.random.uniform(kb, (1, fan_out), jnp.float32, -bound, bound)
    return w, b


if __name__ == "__main__":
    key = jax.random.PRNGKey(0)
    keys = jax.random.split(key, 10)

    B = 16                 # graphs per call (batched)
    N = 16                 # nodes per graph
    feature_dim_size = 16
    num_classes = 4
    f1, f2, f3, bn = 64, 32, 16, 8

    # ---- batch of deterministic normalized adjacencies (glue, plain JAX) ----
    a = (jax.random.uniform(keys[0], (B, N, N)) < 0.3).astype(jnp.float32)
    a = jnp.maximum(a, jnp.swapaxes(a, 1, 2))
    a = jnp.minimum(a + jnp.eye(N, dtype=jnp.float32)[None], 1.0)  # self loops
    deg = jnp.sum(a, axis=2)
    d_inv_sqrt = 1.0 / jnp.sqrt(deg)
    adj_norm = a * d_inv_sqrt[:, :, None] * d_inv_sqrt[:, None, :]

    features = jax.random.normal(keys[1], (B, N, feature_dim_size), jnp.float32)

    # ---- deterministic parameter init ----
    wfc1, bfc1 = linear_init(keys[6], f3, bn)
    wfc2, bfc2 = linear_init(keys[7], bn, num_classes)
    params = dict(
        w1=xavier_uniform(keys[2], (feature_dim_size, f1)),
        b1=jnp.zeros((1, f1), jnp.float32),
        w2=xavier_uniform(keys[3], (f1, f2)),
        b2=jnp.zeros((1, f2), jnp.float32),
        w3=xavier_uniform(keys[4], (f2, f3)),
        b3=jnp.zeros((1, f3), jnp.float32),
        wm=xavier_uniform(keys[5], (f3, f3)),
        wfc1=wfc1, bfc1=bfc1,
        wfc2=wfc2, bfc2=bfc2,
    )

    out = gcn_forward(adj_norm, features, params, num_classes, graphs_per_step=8)
    jax.block_until_ready(out)
    assert out.shape == (B, num_classes) and out.dtype == jnp.float32
    assert bool(jnp.all(jnp.isfinite(out)))
    print("KERNEL_OK")
</pallas_src>

<mosaic_0001>
module attributes {stable_mosaic.version = 11 : i64} {
  func.func @gcn_kernel(%arg0: i32, %arg1: memref<128x128xf32, #tpu.memory_space<vmem>>, %arg2: memref<128x128xf32, #tpu.memory_space<vmem>>, %arg3: memref<6x128x128xf32, #tpu.memory_space<vmem>>, %arg4: memref<8x128xf32, #tpu.memory_space<vmem>>, %arg5: memref<8x128xf32, #tpu.memory_space<vmem>>) attributes {dimension_semantics = [#tpu.dimension_semantics<parallel>], iteration_bounds = array<i64: 2>, scalar_prefetch = 0 : i64, scratch_operands = 0 : i64, tpu.core_type = #tpu.core_type<tc>, window_params = [{transform_indices = @transform_0, window_bounds = array<i64: 128, 128>}, {transform_indices = @transform_1, window_bounds = array<i64: 128, 128>}, {pipeline_mode = #tpu.pipeline_mode<synchronous>, transform_indices = @transform_2, window_bounds = array<i64: 6, 128, 128>}, {pipeline_mode = #tpu.pipeline_mode<synchronous>, transform_indices = @transform_3, window_bounds = array<i64: 8, 128>}, {transform_indices = @transform_4, window_bounds = array<i64: 8, 128>}]} {
    %c0 = arith.constant 0 : index
    %c0_0 = arith.constant 0 : index
    %0 = vector.load %arg1[%c0, %c0_0] : memref<128x128xf32, #tpu.memory_space<vmem>>, vector<128x128xf32>
    %c0_1 = arith.constant 0 : index
    %c0_2 = arith.constant 0 : index
    %1 = vector.load %arg2[%c0_1, %c0_2] : memref<128x128xf32, #tpu.memory_space<vmem>>, vector<128x128xf32>
    %c0_3 = arith.constant 0 : index
    %c0_4 = arith.constant 0 : index
    %c0_5 = arith.constant 0 : index
    %2 = vector.load %arg3[%c0_3, %c0_4, %c0_5] : memref<6x128x128xf32, #tpu.memory_space<vmem>>, vector<1x128x128xf32>
    %3 = vector.shape_cast %2 : vector<1x128x128xf32> to vector<128x128xf32>
    %cst = arith.constant dense<0.000000e+00> : vector<128x128xf32>
    %4 = tpu.matmul %1, %3, %cst {dimension_numbers = #tpu.dot_dimension_numbers<[1], [0], [0], [1], [0, 0, 1, 1], [], []>} : vector<128x128xf32>, vector<128x128xf32>, vector<128x128xf32> -> vector<128x128xf32>
    %cst_6 = arith.constant dense<0.000000e+00> : vector<128x128xf32>
    %5 = tpu.matmul %0, %4, %cst_6 {dimension_numbers = #tpu.dot_dimension_numbers<[1], [0], [0], [1], [0, 0, 1, 1], [], []>} : vector<128x128xf32>, vector<128x128xf32>, vector<128x128xf32> -> vector<128x128xf32>
    %c0_7 = arith.constant 0 : index
    %c0_8 = arith.constant 0 : index
    %6 = vector.load %arg4[%c0_7, %c0_8] : memref<8x128xf32, #tpu.memory_space<vmem>>, vector<1x128xf32>
    %7 = vector.shape_cast %6 : vector<1x128xf32> to vector<128xf32>
    %8 = vector.shape_cast %7 : vector<128xf32> to vector<1x128xf32>
    %9 = vector.broadcast %8 : vector<1x128xf32> to vector<128x128xf32>
    %10 = arith.addf %5, %9 : vector<128x128xf32>
    %cst_9 = arith.constant 0.000000e+00 : f32
    %11 = vector.broadcast %cst_9 : f32 to vector<128x128xf32>
    %12 = arith.maximumf %10, %11 : vector<128x128xf32>
    %c1 = arith.constant 1 : index
    %c0_10 = arith.constant 0 : index
    %c0_11 = arith.constant 0 : index
    %13 = vector.load %arg3[%c1, %c0_10, %c0_11] : memref<6x128x128xf32, #tpu.memory_space<vmem>>, vector<1x128x128xf32>
    %14 = vector.shape_cast %13 : vector<1x128x128xf32> to vector<128x128xf32>
    %cst_12 = arith.constant dense<0.000000e+00> : vector<128x128xf32>
    %15 = tpu.matmul %12, %14, %cst_12 {dimension_numbers = #tpu.dot_dimension_numbers<[1], [0], [0], [1], [0, 0, 1, 1], [], []>} : vector<128x128xf32>, vector<128x128xf32>, vector<128x128xf32> -> vector<128x128xf32>
    %cst_13 = arith.constant dense<0.000000e+00> : vector<128x128xf32>
    %16 = tpu.matmul %0, %15, %cst_13 {dimension_numbers = #tpu.dot_dimension_numbers<[1], [0], [0], [1], [0, 0, 1, 1], [], []>} : vector<128x128xf32>, vector<128x128xf32>, vector<128x128xf32> -> vector<128x128xf32>
    %c1_14 = arith.constant 1 : index
    %c0_15 = arith.constant 0 : index
    %17 = vector.load %arg4[%c1_14, %c0_15] : memref<8x128xf32, #tpu.memory_space<vmem>>, vector<1x128xf32>
    %18 = vector.shape_cast %17 : vector<1x128xf32> to vector<128xf32>
    %19 = vector.shape_cast %18 : vector<128xf32> to vector<1x128xf32>
    %20 = vector.broadcast %19 : vector<1x128xf32> to vector<128x128xf32>
    %21 = arith.addf %16, %20 : vector<128x128xf32>
    %cst_16 = arith.constant 0.000000e+00 : f32
    %22 = vector.broadcast %cst_16 : f32 to vector<128x128xf32>
    %23 = arith.maximumf %21, %22 : vector<128x128xf32>
    %c2 = arith.constant 2 : index
    %c0_17 = arith.constant 0 : index
    %c0_18 = arith.constant 0 : index
    %24 = vector.load %arg3[%c2, %c0_17, %c0_18] : memref<6x128x128xf32, #tpu.memory_space<vmem>>, vector<1x128x128xf32>
    %25 = vector.shape_cast %24 : vector<1x128x128xf32> to vector<128x128xf32>
    %cst_19 = arith.constant dense<0.000000e+00> : vector<128x128xf32>
    %26 = tpu.matmul %23, %25, %cst_19 {dimension_numbers = #tpu.dot_dimension_numbers<[1], [0], [0], [1], [0, 0, 1, 1], [], []>} : vector<128x128xf32>, vector<128x128xf32>, vector<128x128xf32> -> vector<128x128xf32>
    %cst_20 = arith.constant dense<0.000000e+00> : vector<128x128xf32>
    %27 = tpu.matmul %0, %26, %cst_20 {dimension_numbers = #tpu.dot_dimension_numbers<[1], [0], [0], [1], [0, 0, 1, 1], [], []>} : vector<128x128xf32>, vector<128x128xf32>, vector<128x128xf32> -> vector<128x128xf32>
    %c2_21 = arith.constant 2 : index
    %c0_22 = arith.constant 0 : index
    %28 = vector.load %arg4[%c2_21, %c0_22] : memref<8x128xf32, #tpu.memory_space<vmem>>, vector<1x128xf32>
    %29 = vector.shape_cast %28 : vector<1x128xf32> to vector<128xf32>
    %30 = vector.shape_cast %29 : vector<128xf32> to vector<1x128xf32>
    %31 = vector.broadcast %30 : vector<1x128xf32> to vector<128x128xf32>
    %32 = arith.addf %27, %31 : vector<128x128xf32>
    %cst_23 = arith.constant 0.000000e+00 : f32
    %33 = vector.broadcast %cst_23 : f32 to vector<128x128xf32>
    %34 = arith.maximumf %32, %33 : vector<128x128xf32>
    %35 = tpu.iota {dimensions = array<i32: 1>} : vector<8x128xi32>
    %36 = tpu.iota {dimensions = array<i32: 0>} : vector<8x128xi32>
    %c16_i32 = arith.constant 16 : i32
    %37 = vector.broadcast %c16_i32 : i32 to vector<8x128xi32>
    %38 = arith.muli %36, %37 : vector<8x128xi32>
    %39 = arith.cmpi sge, %35, %38 : vector<8x128xi32>
    %c1_i32 = arith.constant 1 : i32
    %40 = vector.broadcast %c1_i32 : i32 to vector<8x128xi32>
    %41 = arith.addi %36, %40 : vector<8x128xi32>
    %c16_i32_24 = arith.constant 16 : i32
    %42 = vector.broadcast %c16_i32_24 : i32 to vector<8x128xi32>
    %43 = arith.muli %41, %42 : vector<8x128xi32>
    %44 = arith.cmpi slt, %35, %43 : vector<8x128xi32>
    %45 = arith.andi %39, %44 : vector<8x128xi1>
    %46 = arith.extui %45 : vector<8x128xi1> to vector<8x128xi32>
    %47 = arith.sitofp %46 : vector<8x128xi32> to vector<8x128xf32>
    %48 = tpu.iota {dimensions = array<i32: 0>} : vector<128x8xi32>
    %49 = tpu.iota {dimensions = array<i32: 1>} : vector<128x8xi32>
    %c16_i32_25 = arith.constant 16 : i32
    %50 = vector.broadcast %c16_i32_25 : i32 to vector<128x8xi32>
    %51 = arith.muli %49, %50 : vector<128x8xi32>
    %52 = arith.cmpi sge, %48, %51 : vector<128x8xi32>
    %c1_i32_26 = arith.constant 1 : i32
    %53 = vector.broadcast %c1_i32_26 : i32 to vector<128x8xi32>
    %54 = arith.addi %49, %53 : vector<128x8xi32>
    %c16_i32_27 = arith.constant 16 : i32
    %55 = vector.broadcast %c16_i32_27 : i32 to vector<128x8xi32>
    %56 = arith.muli %54, %55 : vector<128x8xi32>
    %57 = arith.cmpi slt, %48, %56 : vector<128x8xi32>
    %58 = arith.andi %52, %57 : vector<128x8xi1>
    %59 = arith.extui %58 : vector<128x8xi1> to vector<128x8xi32>
    %60 = arith.sitofp %59 : vector<128x8xi32> to vector<128x8xf32>
    %c3 = arith.constant 3 : index
    %c0_28 = arith.constant 0 : index
    %c0_29 = arith.constant 0 : index
    %61 = vector.load %arg3[%c3, %c0_28, %c0_29] : memref<6x128x128xf32, #tpu.memory_space<vmem>>, vector<1x128x128xf32>
    %62 = vector.shape_cast %61 : vector<1x128x128xf32> to vector<128x128xf32>
    %cst_30 = arith.constant dense<0.000000e+00> : vector<128x128xf32>
    %63 = tpu.matmul %34, %62, %cst_30 {dimension_numbers = #tpu.dot_dimension_numbers<[1], [0], [0], [1], [0, 0, 1, 1], [], []>} : vector<128x128xf32>, vector<128x128xf32>, vector<128x128xf32> -> vector<128x128xf32>
    %cst_31 = arith.constant dense<0.000000e+00> : vector<8x128xf32>
    %64 = tpu.matmul %47, %63, %cst_31 {dimension_numbers = #tpu.dot_dimension_numbers<[1], [0], [0], [1], [0, 0, 1, 1], [], []>} : vector<8x128xf32>, vector<128x128xf32>, vector<8x128xf32> -> vector<8x128xf32>
    %cst_32 = arith.constant 6.250000e-02 : f32
    %65 = vector.broadcast %cst_32 : f32 to vector<8x128xf32>
    %66 = arith.mulf %64, %65 : vector<8x128xf32>
    %67 = math.tanh %66 : vector<8x128xf32>
    %cst_33 = arith.constant dense<0.000000e+00> : vector<128x128xf32>
    %68 = tpu.matmul %60, %67, %cst_33 {dimension_numbers = #tpu.dot_dimension_numbers<[1], [0], [0], [1], [0, 0, 1, 1], [], []>} : vector<128x8xf32>, vector<8x128xf32>, vector<128x128xf32> -> vector<128x128xf32>
    %69 = arith.mulf %34, %68 : vector<128x128xf32>
    %cst_34 = arith.constant dense<0.000000e+00> : vector<128xf32>
    %70 = vector.multi_reduction <add>, %69, %cst_34 [1] : vector<128x128xf32> to vector<128xf32>
    %71 = vector.shape_cast %70 : vector<128xf32> to vector<128x1xf32>
    %72 = arith.negf %71 : vector<128x1xf32>
    %73 = math.exp %72 : vector<128x1xf32>
    %cst_35 = arith.constant 1.000000e+00 : f32
    %74 = vector.broadcast %cst_35 : f32 to vector<128x1xf32>
    %75 = arith.addf %74, %73 : vector<128x1xf32>
    %76 = arith.divf %74, %75 : vector<128x1xf32>
    %77 = vector.broadcast %76 : vector<128x1xf32> to vector<128x128xf32>
    %78 = arith.mulf %34, %77 : vector<128x128xf32>
    %cst_36 = arith.constant dense<0.000000e+00> : vector<8x128xf32>
    %79 = tpu.matmul %47, %78, %cst_36 {dimension_numbers = #tpu.dot_dimension_numbers<[1], [0], [0], [1], [0, 0, 1, 1], [], []>} : vector<8x128xf32>, vector<128x128xf32>, vector<8x128xf32> -> vector<8x128xf32>
    %c4 = arith.constant 4 : index
    %c0_37 = arith.constant 0 : index
    %c0_38 = arith.constant 0 : index
    %80 = vector.load %arg3[%c4, %c0_37, %c0_38] : memref<6x128x128xf32, #tpu.memory_space<vmem>>, vector<1x128x128xf32>
    %81 = vector.shape_cast %80 : vector<1x128x128xf32> to vector<128x128xf32>
    %cst_39 = arith.constant dense<0.000000e+00> : vector<8x128xf32>
    %82 = tpu.matmul %79, %81, %cst_39 {dimension_numbers = #tpu.dot_dimension_numbers<[1], [0], [0], [1], [0, 0, 1, 1], [], []>} : vector<8x128xf32>, vector<128x128xf32>, vector<8x128xf32> -> vector<8x128xf32>
    %c3_40 = arith.constant 3 : index
    %c0_41 = arith.constant 0 : index
    %83 = vector.load %arg4[%c3_40, %c0_41] : memref<8x128xf32, #tpu.memory_space<vmem>>, vector<1x128xf32>
    %84 = vector.shape_cast %83 : vector<1x128xf32> to vector<128xf32>
    %85 = vector.shape_cast %84 : vector<128xf32> to vector<1x128xf32>
    %86 = vector.broadcast %85 : vector<1x128xf32> to vector<8x128xf32>
    %87 = arith.addf %82, %86 : vector<8x128xf32>
    %cst_42 = arith.constant 0.000000e+00 : f32
    %88 = vector.broadcast %cst_42 : f32 to vector<8x128xf32>
    %89 = arith.maximumf %87, %88 : vector<8x128xf32>
    %c5 = arith.constant 5 : index
    %c0_43 = arith.constant 0 : index
    %c0_44 = arith.constant 0 : index
    %90 = vector.load %arg3[%c5, %c0_43, %c0_44] : memref<6x128x128xf32, #tpu.memory_space<vmem>>, vector<1x128x128xf32>
    %91 = vector.shape_cast %90 : vector<1x128x128xf32> to vector<128x128xf32>
    %cst_45 = arith.constant dense<0.000000e+00> : vector<8x128xf32>
    %92 = tpu.matmul %89, %91, %cst_45 {dimension_numbers = #tpu.dot_dimension_numbers<[1], [0], [0], [1], [0, 0, 1, 1], [], []>} : vector<8x128xf32>, vector<128x128xf32>, vector<8x128xf32> -> vector<8x128xf32>
    %c4_46 = arith.constant 4 : index
    %c0_47 = arith.constant 0 : index
    %93 = vector.load %arg4[%c4_46, %c0_47] : memref<8x128xf32, #tpu.memory_space<vmem>>, vector<1x128xf32>
    %94 = vector.shape_cast %93 : vector<1x128xf32> to vector<128xf32>
    %95 = vector.shape_cast %94 : vector<128xf32> to vector<1x128xf32>
    %96 = vector.broadcast %95 : vector<1x128xf32> to vector<8x128xf32>
    %97 = arith.addf %92, %96 : vector<8x128xf32>
    %98 = tpu.iota {dimensions = array<i32: 1>} : vector<8x128xi32>
    %c4_i32 = arith.constant 4 : i32
    %99 = vector.broadcast %c4_i32 : i32 to vector<8x128xi32>
    %100 = arith.cmpi slt, %98, %99 : vector<8x128xi32>
    %cst_48 = arith.constant -1.000000e+30 : f32
    %101 = vector.broadcast %cst_48 : f32 to vector<8x128xf32>
    %102 = arith.select %100, %97, %101 : vector<8x128xi1>, vector<8x128xf32>
    %cst_49 = arith.constant dense<0xFF800000> : vector<8xf32>
    %103 = vector.multi_reduction <maximumf>, %102, %cst_49 [1] : vector<8x128xf32> to vector<8xf32>
    %104 = vector.shape_cast %103 : vector<8xf32> to vector<8x1xf32>
    %105 = vector.broadcast %104 : vector<8x1xf32> to vector<8x128xf32>
    %106 = arith.subf %102, %105 : vector<8x128xf32>
    %107 = math.exp %106 : vector<8x128xf32>
    %cst_50 = arith.constant dense<0.000000e+00> : vector<8xf32>
    %108 = vector.multi_reduction <add>, %107, %cst_50 [1] : vector<8x128xf32> to vector<8xf32>
    %109 = vector.shape_cast %108 : vector<8xf32> to vector<8x1xf32>
    %110 = math.log %109 : vector<8x1xf32>
    %111 = arith.addf %104, %110 : vector<8x1xf32>
    %112 = vector.broadcast %111 : vector<8x1xf32> to vector<8x128xf32>
    %113 = arith.subf %102, %112 : vector<8x128xf32>
    %c0_51 = arith.constant 0 : index
    %c0_52 = arith.constant 0 : index
    %114 = vector.load %arg5[%c0_51, %c0_52] : memref<8x128xf32, #tpu.memory_space<vmem>>, vector<8x128xf32>
    tpu.vector_store %arg5[%c0_51, %c0_52], %113 {strides = array<i32>} : memref<8x128xf32, #tpu.memory_space<vmem>>, vector<8x128xf32>,
    return
  }
  func.func @transform_0(%arg0: i32) -> (i32, i32) {
    %c0_i32 = arith.constant 0 : i32
    %c0_i32_0 = arith.constant 0 : i32
    return %arg0, %c0_i32 : i32, i32
  }
  func.func @transform_1(%arg0: i32) -> (i32, i32) {
    %c0_i32 = arith.constant 0 : i32
    %c0_i32_0 = arith.constant 0 : i32
    return %arg0, %c0_i32 : i32, i32
  }
  func.func @transform_2(%arg0: i32) -> (i32, i32, i32) {
    %c0_i32 = arith.constant 0 : i32
    %c0_i32_0 = arith.constant 0 : i32
    %c0_i32_1 = arith.constant 0 : i32
    %c0_i32_2 = arith.constant 0 : i32
    return %c0_i32, %c0_i32_0, %c0_i32_1 : i32, i32, i32
  }
  func.func @transform_3(%arg0: i32) -> (i32, i32) {
    %c0_i32 = arith.constant 0 : i32
    %c0_i32_0 = arith.constant 0 : i32
    %c0_i32_1 = arith.constant 0 : i32
    return %c0_i32, %c0_i32_0 : i32, i32
  }
  func.func @transform_4(%arg0: i32) -> (i32, i32) {
    %c0_i32 = arith.constant 0 : i32
    %c0_i32_0 = arith.constant 0 : i32
    return %arg0, %c0_i32 : i32, i32
  }
}

</mosaic_0001>

<llo_original>
// kernel: tpu_custom_call.1
$region0: #{tpu_custom_call.1}
  #allocation0 [shape = 'u32[]', space=smem, size = 0x4, offset = 0x4, fixed_abs, tag = 'smem constant byte address 0x4 - core index']
  #allocation1 [shape = 'u32[72,128]{1,0:T(1,128)}', space=vmem, size = 0x9000, scoped, tag = 'internal scratch']
  %s0 = inlined_call_operand.hbm [shape: f32[256,128], index: 0, kind: input, shape index: {}]
  %s1 = inlined_call_operand.hbm [shape: f32[256,128], index: 1, kind: input, shape index: {}]
  %s2 = inlined_call_operand.hbm [shape: f32[6,128,128], index: 2, kind: input, shape index: {}]
  %s3 = inlined_call_operand.hbm [shape: f32[8,128], index: 3, kind: input, shape index: {}]
  %s4 = inlined_call_operand.hbm [shape: f32[16,128], index: 4, kind: output, shape index: {}]
  %s5 = sld [smem:[#allocation0]]
  $region65: #{tpu_custom_call.1} parent=0
    _
  %s7 = ssub.s32 1, %s5
  %s8 = scalar_select 0, %s7, %s5
  $region1: #{tpu_custom_call.1} parent=0
    #allocation2 [shape = 'u8[131072]{0}', space=vmem, size = 0x20000, scoped, tag = 'input window, operand 0']
    #allocation3 [shape = 's32[2]{0}', space=sflag, size = 0x8, scoped, tag = 'scoped memory for tpu_custom_call.1']
    #allocation4 [shape = 's32[2]{0}', space=sflag, size = 0x8, scoped, tag = 'scoped memory for tpu_custom_call.1']
    #allocation5 [shape = 'u8[131072]{0}', space=vmem, size = 0x20000, scoped, tag = 'input window, operand 1']
    #allocation6 [shape = 's32[2]{0}', space=sflag, size = 0x8, scoped, tag = 'scoped memory for tpu_custom_call.1']
    #allocation7 [shape = 'u8[393216]{0}', space=vmem, size = 0x60000, scoped, tag = 'input window, operand 2, single buffered']
    #allocation8 [shape = 'u8[4096]{0}', space=vmem, size = 0x1000, scoped, tag = 'input window, operand 3, single buffered']
    #allocation9 [shape = 's32[1]{0}', space=sflag, size = 0x4, scoped, tag = 'scoped memory for tpu_custom_call.1']
    #allocation10 [shape = 'u8[8192]{0}', space=vmem, size = 0x2000, scoped, tag = 'output window, operand 0']
    %9 = vsyncpa [#allocation3], 0
    %s10 = scalar_lea.sflag [#allocation3], 1
    %11 = vsyncpa %s10, 0
    %12 = vsyncpa [#allocation6], 0
    %s13 = scalar_lea.sflag [#allocation6], 1
    %14 = vsyncpa %s13, 0
    %15 = vsyncpa [#allocation9], 0
    %16 = vsyncpa [#allocation4], 0
    %s17 = scalar_lea.sflag [#allocation4], 1
    %18 = vsyncpa %s17, 0
    loop: start=0, step=1, limit=4
    $region2: #{tpu_custom_call.1} parent=1 // loop_pre_header
      _
    $region3: #{tpu_custom_call.1} parent=1 // loop_header
      %s20 = sphi 0, %s24
      %p21 = scmp.ge.s32.totalorder %s20, 4
      %s30 = sphi 0, %s32
      %s33 = sphi 0, %s30
      %s34 = sphi 0, %s33
      %s50 = sphi 0, %s34
      %s56 = sphi 0, %s58
      %s59 = sphi 0, %s56
      %s60 = sphi 0, %s59
      %s76 = sphi 0, %s60
      %s80 = sphi 0, %s80
      %s82 = sphi 0, %s80
      %s83 = sphi 0, %s82
      %s97 = sphi 0, %s83
      %s101 = sphi 0, %s101
      %s103 = sphi 0, %s101
      %s104 = sphi 0, %s103
      %s118 = sphi 0, %s104
      %s124 = sphi 0, %s126
      %s127 = sphi 0, %s124
      %s128 = sphi 0, %s127
      %s144 = sphi 0, %s128
    $region4: #{tpu_custom_call.1} parent=1 // loop_header_branch
      %23 = sbr.rel (%p21) target = $region8
    $region5: #{tpu_custom_call.1} parent=1 // loop_body
      %s25 = ssub.s32 %s20, 1
      %s26 = ssub.s32 %s20, 2
      %s27 = sadd.s32 %s20, 1
      %s28 = ssub.s32 %s20, %s27
      %p29 = scmp.eq.s32.totalorder %s28, 0
      %s31 = sadd.s32 %s30, 1
      %s32 = scalar_select %p29, %s30, %s31
      %p35 = pneg %p29
      %p36 = scmp.eq.s32.totalorder %s20, 1
      %p37 = por %p35, %p36
      %p38 = scmp.ne.s32.totalorder %s30, %s33
      %p39 = scmp.eq.s32.totalorder %s20, 0
      %p40 = por %p38, %p39
      %p41 = scmp.ne.s32.totalorder %s30, %s33
      %p42 = scmp.eq.s32.totalorder %s25, 1
      %p43 = por %p41, %p42
      %p44 = scmp.ne.s32.totalorder %s33, %s34
      %p45 = scmp.eq.s32.totalorder %s25, 0
      %p46 = por %p44, %p45
      %p47 = scmp.ne.s32.totalorder %s33, %s34
      %p48 = scmp.eq.s32.totalorder %s26, 1
      %p49 = por %p47, %p48
      %p51 = scmp.ne.s32.totalorder %s34, %s50
      %p52 = scmp.eq.s32.totalorder %s26, 0
      %p53 = por %p51, %p52
      %s54 = ssub.s32 %s20, %s27
      %p55 = scmp.eq.s32.totalorder %s54, 0
      %s57 = sadd.s32 %s56, 1
      %s58 = scalar_select %p55, %s56, %s57
      %p61 = pneg %p55
      %p62 = scmp.eq.s32.totalorder %s20, 1
      %p63 = por %p61, %p62
      %p64 = scmp.ne.s32.totalorder %s56, %s59
      %p65 = scmp.eq.s32.totalorder %s20, 0
      %p66 = por %p64, %p65
      %p67 = scmp.ne.s32.totalorder %s56, %s59
      %p68 = scmp.eq.s32.totalorder %s25, 1
      %p69 = por %p67, %p68
      %p70 = scmp.ne.s32.totalorder %s59, %s60
      %p71 = scmp.eq.s32.totalorder %s25, 0
      %p72 = por %p70, %p71
      %p73 = scmp.ne.s32.totalorder %s59, %s60
      %p74 = scmp.eq.s32.totalorder %s26, 1
      %p75 = por %p73, %p74
      %p77 = scmp.ne.s32.totalorder %s60, %s76
      %p78 = scmp.eq.s32.totalorder %s26, 0
      %p79 = por %p77, %p78
      %s81 = sadd.s32 %s80, 1
      %p84 = scmp.eq.s32.totalorder %s20, 1
      %p85 = scmp.ne.s32.totalorder %s80, %s82
      %p86 = scmp.eq.s32.totalorder %s20, 0
      %p87 = por %p85, %p86
      %p88 = scmp.ne.s32.totalorder %s80, %s82
      %p89 = scmp.eq.s32.totalorder %s25, 1
      %p90 = por %p88, %p89
      %p91 = scmp.ne.s32.totalorder %s82, %s83
      %p92 = scmp.eq.s32.totalorder %s25, 0
      %p93 = por %p91, %p92
      %p94 = scmp.ne.s32.totalorder %s82, %s83
      %p95 = scmp.eq.s32.totalorder %s26, 1
      %p96 = por %p94, %p95
      %p98 = scmp.ne.s32.totalorder %s83, %s97
      %p99 = scmp.eq.s32.totalorder %s26, 0
      %p100 = por %p98, %p99
      %s102 = sadd.s32 %s101, 1
      %p105 = scmp.eq.s32.totalorder %s20, 1
      %p106 = scmp.ne.s32.totalorder %s101, %s103
      %p107 = scmp.eq.s32.totalorder %s20, 0
      %p108 = por %p106, %p107
      %p109 = scmp.ne.s32.totalorder %s101, %s103
      %p110 = scmp.eq.s32.totalorder %s25, 1
      %p111 = por %p109, %p110
      %p112 = scmp.ne.s32.totalorder %s103, %s104
      %p113 = scmp.eq.s32.totalorder %s25, 0
      %p114 = por %p112, %p113
      %p115 = scmp.ne.s32.totalorder %s103, %s104
      %p116 = scmp.eq.s32.totalorder %s26, 1
      %p117 = por %p115, %p116
      %p119 = scmp.ne.s32.totalorder %s104, %s118
      %p120 = scmp.eq.s32.totalorder %s26, 0
      %p121 = por %p119, %p120
      %s122 = ssub.s32 %s20, %s27
      %p123 = scmp.eq.s32.totalorder %s122, 0
      %s125 = sadd.s32 %s124, 1
      %s126 = scalar_select %p123, %s124, %s125
      %p129 = pneg %p123
      %p130 = scmp.eq.s32.totalorder %s20, 1
      %p131 = por %p129, %p130
      %p132 = scmp.ne.s32.totalorder %s124, %s127
      %p133 = scmp.eq.s32.totalorder %s20, 0
      %p134 = por %p132, %p133
      %p135 = scmp.ne.s32.totalorder %s124, %s127
      %p136 = scmp.eq.s32.totalorder %s25, 1
      %p137 = por %p135, %p136
      %p138 = scmp.ne.s32.totalorder %s127, %s128
      %p139 = scmp.eq.s32.totalorder %s25, 0
      %p140 = por %p138, %p139
      %p141 = scmp.ne.s32.totalorder %s127, %s128
      %p142 = scmp.eq.s32.totalorder %s26, 1
      %p143 = por %p141, %p142
      %p145 = scmp.ne.s32.totalorder %s128, %s144
      %p146 = scmp.eq.s32.totalorder %s26, 0
      %p147 = por %p145, %p146
      %p148 = scmp.le.s32.totalorder 1, %s20
      %p149 = scmp.lt.s32.totalorder %s20, 3
      %p150 = pnand %p148, %p149
      %p151 = pneg %p150
      // Predicated region
      $region9: #{tpu_custom_call.1} parent=5 // pred_check
        _
      $region10: #{tpu_custom_call.1} parent=5 // pred_check_branch
        %153 = sbr.rel (%p150) target = $region12
      $region11: #{tpu_custom_call.1} parent=5 // pred_region
        %s154 = ssub.s32 %s20, 1
        // Predicated region
        $region13: #{tpu_custom_call.1} parent=11 // pred_check
          %p155 = pneg %p93
        $region14: #{tpu_custom_call.1} parent=11 // pred_check_branch
          %157 = sbr.rel (%p155) target = $region16
        $region15: #{tpu_custom_call.1} parent=11 // pred_region
          %159 = vsyncadd [#allocation6], 0
          %s160 = sshll.u32 %s2, 4
          %s161 = int_to_ptr.hbm [resolvable:$true] %s160
          %s162 = sshll.u32 [#allocation7], 4
          %s163 = int_to_ptr.vmem [resolvable:$true] %s162
          %168 = dma.hbm_to_vmem [thread:$0]  %s161, 12288, %s163, [#allocation6], 128, 128, 8
        $region16: #{tpu_custom_call.1} parent=11 // pred_fallthru
          _
        // Predicated region
        $region17: #{tpu_custom_call.1} parent=11 // pred_check
          %p169 = pneg %p114
        $region18: #{tpu_custom_call.1} parent=11 // pred_check_branch
          %171 = sbr.rel (%p169) target = $region20
        $region19: #{tpu_custom_call.1} parent=11 // pred_region
          %173 = vsyncadd [#allocation9], 0
          %s175 = sshll.u32 %s3, 4
          %s176 = int_to_ptr.hbm [resolvable:$true] %s175
          %s177 = sshll.u32 [#allocation8], 4
          %s178 = int_to_ptr.vmem [resolvable:$true] %s177
          %180 = dma.hbm_to_vmem [thread:$0]  %s176, 128, %s178, [#allocation9]
        $region20: #{tpu_custom_call.1} parent=11 // pred_fallthru
          _
      $region12: #{tpu_custom_call.1} parent=5 // pred_fallthru
        _
      %p181 = scmp.lt.s32.totalorder %s20, 2
      // Predicated region
      $region21: #{tpu_custom_call.1} parent=5 // pred_check
        %p182 = pneg %p181
      $region22: #{tpu_custom_call.1} parent=5 // pred_check_branch
        %184 = sbr.rel (%p182) target = $region24
      $region23: #{tpu_custom_call.1} parent=5 // pred_region
        // Predicated region
        $region25: #{tpu_custom_call.1} parent=23 // pred_check
          %p185 = pneg %p40
        $region26: #{tpu_custom_call.1} parent=23 // pred_check_branch
          %187 = sbr.rel (%p185) target = $region28
        $region27: #{tpu_custom_call.1} parent=23 // pred_region
          %s188 = sand.u32 %s30, 1
          %s189 = scalar_lea.sflag [#allocation3], %s188
          %s190 = sand.u32 %s30, 1
          %s191 = smul.addr %s190, 128
          %s192 = scalar_lea.vmem [#allocation2], %s191
          %s193 = smul.u32 16, %s20
          %195 = vsyncadd %s189, 0
          %s196 = smul.addr %s193, 8
          %s197 = scalar_lea.hbm %s0, %s196
          %s198 = sshll.u32 %s197, 4
          %s199 = int_to_ptr.hbm [resolvable:$true] %s198
          %s200 = sshll.u32 %s192, 4
          %s201 = int_to_ptr.vmem [resolvable:$true] %s200
          %206 = dma.hbm_to_vmem [thread:$0]  %s199, 2048, %s201, %s189, 128, 128, 8
        $region28: #{tpu_custom_call.1} parent=23 // pred_fallthru
          _
        // Predicated region
        $region29: #{tpu_custom_call.1} parent=23 // pred_check
          %p207 = pneg %p66
        $region30: #{tpu_custom_call.1} parent=23 // pred_check_branch
          %209 = sbr.rel (%p207) target = $region32
        $region31: #{tpu_custom_call.1} parent=23 // pred_region
          %s210 = sand.u32 %s20, 1
          %s211 = scalar_lea.sflag [#allocation6], %s210
          %s212 = sand.u32 %s56, 1
          %s213 = smul.addr %s212, 128
          %s214 = scalar_lea.vmem [#allocation5], %s213
          %s215 = smul.u32 16, %s20
          %217 = vsyncadd %s211, 0
          %s218 = smul.addr %s215, 8
          %s219 = scalar_lea.hbm %s1, %s218
          %s220 = sshll.u32 %s219, 4
          %s221 = int_to_ptr.hbm [resolvable:$true] %s220
          %s222 = sshll.u32 %s214, 4
          %s223 = int_to_ptr.vmem [resolvable:$true] %s222
          %228 = dma.hbm_to_vmem [thread:$0]  %s221, 2048, %s223, %s211, 128, 128, 8
        $region32: #{tpu_custom_call.1} parent=23 // pred_fallthru
          _
      $region24: #{tpu_custom_call.1} parent=5 // pred_fallthru
        _
      %p229 = scmp.le.s32.totalorder 1, %s20
      %p230 = scmp.lt.s32.totalorder %s20, 3
      %p231 = pnand %p229, %p230
      %p232 = pneg %p231
      // Predicated region
      $region33: #{tpu_custom_call.1} parent=5 // pred_check
        _
      $region34: #{tpu_custom_call.1} parent=5 // pred_check_branch
        %234 = sbr.rel (%p231) target = $region36
      $region35: #{tpu_custom_call.1} parent=5 // pred_region
        %s235 = ssub.s32 %s20, 1
        %s236 = sand.u32 %s33, 1
        %s237 = scalar_lea.sflag [#allocation3], %s236
        %s238 = sand.u32 %s33, 1
        %s239 = smul.addr %s238, 128
        %s240 = scalar_lea.vmem [#allocation2], %s239
        // Predicated region
        $region37: #{tpu_custom_call.1} parent=35 // pred_check
          %p241 = pneg %p46
        $region38: #{tpu_custom_call.1} parent=35 // pred_check_branch
          %243 = sbr.rel (%p241) target = $region40
        $region39: #{tpu_custom_call.1} parent=35 // pred_region
          %245 = dma.done %s237, 2048
        $region40: #{tpu_custom_call.1} parent=35 // pred_fallthru
          _
        %s246 = sand.u32 %s25, 1
        %s247 = scalar_lea.sflag [#allocation6], %s246
        %s248 = sand.u32 %s59, 1
        %s249 = smul.addr %s248, 128
        %s250 = scalar_lea.vmem [#allocation5], %s249
        // Predicated region
        $region41: #{tpu_custom_call.1} parent=35 // pred_check
          %p251 = pneg %p72
        $region42: #{tpu_custom_call.1} parent=35 // pred_check_branch
          %253 = sbr.rel (%p251) target = $region44
        $region43: #{tpu_custom_call.1} parent=35 // pred_region
          %255 = dma.done %s247, 2048
        $region44: #{tpu_custom_call.1} parent=35 // pred_fallthru
          _
        // Predicated region
        $region45: #{tpu_custom_call.1} parent=35 // pred_check
          %p256 = pneg %p93
        $region46: #{tpu_custom_call.1} parent=35 // pred_check_branch
          %258 = sbr.rel (%p256) target = $region48
        $region47: #{tpu_custom_call.1} parent=35 // pred_region
          %260 = dma.done [#allocation6], 12288
        $region48: #{tpu_custom_call.1} parent=35 // pred_fallthru
          _
        // Predicated region
        $region49: #{tpu_custom_call.1} parent=35 // pred_check
          %p261 = pneg %p114
        $region50: #{tpu_custom_call.1} parent=35 // pred_check_branch
          %263 = sbr.rel (%p261) target = $region52
        $region51: #{tpu_custom_call.1} parent=35 // pred_region
          %265 = dma.done [#allocation9], 128
        $region52: #{tpu_custom_call.1} parent=35 // pred_fallthru
          _
        %s266 = sand.u32 %s33, 1
        %s267 = scalar_lea.sflag [#allocation3], %s266
        %s268 = sand.u32 %s33, 1
        %s269 = smul.addr %s268, 128
        %s270 = scalar_lea.vmem [#allocation2], %s269
        %p271 = pneg %p46
        %p272 = pneg %p43
        %s273 = sand.u32 %s25, 1
        %s274 = scalar_lea.sflag [#allocation6], %s273
        %s275 = sand.u32 %s59, 1
        %s276 = smul.addr %s275, 128
        %s277 = scalar_lea.vmem [#allocation5], %s276
        %p278 = pneg %p72
        %p279 = pneg %p69
        %p280 = pneg %p93
        %p281 = pneg %p90
        %p282 = pneg %p114
        %p283 = pneg %p111
        %p284 = pneg %p140
        %p285 = pneg %p137
        %s286 = sand.u32 %s127, 1
        %s287 = scalar_lea.sflag [#allocation4], %s286
        %s288 = sand.u32 %s127, 1
        %s289 = smul.addr %s288, 8
        %s290 = scalar_lea.vmem [#allocation10], %s289
        %s291 = smul.u32 16, %s25
        %s292 = smul.u32 16, %s25
        %v293 = vld [vmem:[%s240] sm:$0xff]
        %v294 = vld [vmem:[%s240 + $0x8] sm:$0xff]
        %v295 = vld [vmem:[%s240 + $0x10] sm:$0xff]
        %v296 = vld [vmem:[%s240 + $0x18] sm:$0xff]
        %v297 = vld [vmem:[%s240 + $0x20] sm:$0xff]
        %v298 = vld [vmem:[%s240 + $0x28] sm:$0xff]
        %v299 = vld [vmem:[%s240 + $0x30] sm:$0xff]
        %v300 = vld [vmem:[%s240 + $0x38] sm:$0xff]
        %v301 = vld [vmem:[%s240 + $0x40] sm:$0xff]
        %v302 = vld [vmem:[%s240 + $0x48] sm:$0xff]
        %v303 = vld [vmem:[%s240 + $0x50] sm:$0xff]
        %v304 = vld [vmem:[%s240 + $0x58] sm:$0xff]
        %v305 = vld [vmem:[%s240 + $0x60] sm:$0xff]
        %v306 = vld [vmem:[%s240 + $0x68] sm:$0xff]
        %v307 = vld [vmem:[%s240 + $0x70] sm:$0xff]
        %v308 = vld [vmem:[%s240 + $0x78] sm:$0xff]
        %v309 = vld [vmem:[%s250] sm:$0xff]
        %v310 = vld [vmem:[%s250 + $0x8] sm:$0xff]
        %v311 = vld [vmem:[%s250 + $0x10] sm:$0xff]
        %v312 = vld [vmem:[%s250 + $0x18] sm:$0xff]
        %v313 = vld [vmem:[%s250 + $0x20] sm:$0xff]
        %v314 = vld [vmem:[%s250 + $0x28] sm:$0xff]
        %v315 = vld [vmem:[%s250 + $0x30] sm:$0xff]
        %v316 = vld [vmem:[%s250 + $0x38] sm:$0xff]
        %v317 = vld [vmem:[%s250 + $0x40] sm:$0xff]
        %v318 = vld [vmem:[%s250 + $0x48] sm:$0xff]
        %v319 = vld [vmem:[%s250 + $0x50] sm:$0xff]
        %v320 = vld [vmem:[%s250 + $0x58] sm:$0xff]
        %v321 = vld [vmem:[%s250 + $0x60] sm:$0xff]
        %v322 = vld [vmem:[%s250 + $0x68] sm:$0xff]
        %v323 = vld [vmem:[%s250 + $0x70] sm:$0xff]
        %v324 = vld [vmem:[%s250 + $0x78] sm:$0xff]
        %v325 = vld [vmem:[#allocation7] sm:$0xff]
        %v326 = vld [vmem:[#allocation7 + $0x8] sm:$0xff]
        %v327 = vld [vmem:[#allocation7 + $0x10] sm:$0xff]
        %v328 = vld [vmem:[#allocation7 + $0x18] sm:$0xff]
        %v329 = vld [vmem:[#allocation7 + $0x20] sm:$0xff]
        %v330 = vld [vmem:[#allocation7 + $0x28] sm:$0xff]
        %v331 = vld [vmem:[#allocation7 + $0x30] sm:$0xff]
        %v332 = vld [vmem:[#allocation7 + $0x38] sm:$0xff]
        %v333 = vld [vmem:[#allocation7 + $0x40] sm:$0xff]
        %v334 = vld [vmem:[#allocation7 + $0x48] sm:$0xff]
        %v335 = vld [vmem:[#allocation7 + $0x50] sm:$0xff]
        %v336 = vld [vmem:[#allocation7 + $0x58] sm:$0xff]
        %v337 = vld [vmem:[#allocation7 + $0x60] sm:$0xff]
        %v338 = vld [vmem:[#allocation7 + $0x68] sm:$0xff]
        %v339 = vld [vmem:[#allocation7 + $0x70] sm:$0xff]
        %v340 = vld [vmem:[#allocation7 + $0x78] sm:$0xff]
        %341 = vmatpush.msra.mxu0 %v340
        %342 = vmatpush.msra.mxu0 %v339
        %343 = vmatpush.msra.mxu0 %v338
        %344 = vmatpush.msra.mxu0 %v337
        %345 = vmatpush.msra.mxu0 %v336
        %346 = vmatpush.msra.mxu0 %v335
        %347 = vmatpush.msra.mxu0 %v334
        %348 = vmatpush.msra.mxu0 %v333
        %349 = vmatpush.msra.mxu0 %v332
        %350 = vmatpush.msra.mxu0 %v331
        %351 = vmatpush.msra.mxu0 %v330
        %352 = vmatpush.msra.mxu0 %v329
        %353 = vmatpush.msra.mxu0 %v328
        %354 = vmatpush.msra.mxu0 %v327
        %355 = vmatpush.msra.mxu0 %v326
        %356 = vmatpush.msra.mxu0 %v325
        %357 = vmatmul.f32.gmra.mxu0 %v309
        %v358 = vpop.f32.mrf.mxu0
        %v359 = vadd.f32 0.0, %v358
        %360 = vmatmul.f32.gmra.mxu0 %v310
        %v361 = vpop.f32.mrf.mxu0
        %v362 = vadd.f32 0.0, %v361
        %363 = vmatmul.f32.gmra.mxu0 %v311
        %v364 = vpop.f32.mrf.mxu0
        %v365 = vadd.f32 0.0, %v364
        %366 = vmatmul.f32.gmra.mxu0 %v312
        %v367 = vpop.f32.mrf.mxu0
        %v368 = vadd.f32 0.0, %v367
        %369 = vmatmul.f32.gmra.mxu0 %v313
        %v370 = vpop.f32.mrf.mxu0
        %v371 = vadd.f32 0.0, %v370
        %372 = vmatmul.f32.gmra.mxu0 %v314
        %v373 = vpop.f32.mrf.mxu0
        %v374 = vadd.f32 0.0, %v373
        %375 = vmatmul.f32.gmra.mxu0 %v315
        %v376 = vpop.f32.mrf.mxu0
        %v377 = vadd.f32 0.0, %v376
        %378 = vmatmul.f32.gmra.mxu0 %v316
        %v379 = vpop.f32.mrf.mxu0
        %v380 = vadd.f32 0.0, %v379
        %381 = vmatmul.f32.gmra.mxu0 %v317
        %v382 = vpop.f32.mrf.mxu0
        %v383 = vadd.f32 0.0, %v382
        %384 = vmatmul.f32.gmra.mxu0 %v318
        %v385 = vpop.f32.mrf.mxu0
        %v386 = vadd.f32 0.0, %v385
        %387 = vmatmul.f32.gmra.mxu0 %v319
        %v388 = vpop.f32.mrf.mxu0
        %v389 = vadd.f32 0.0, %v388
        %390 = vmatmul.f32.gmra.mxu0 %v320
        %v391 = vpop.f32.mrf.mxu0
        %v392 = vadd.f32 0.0, %v391
        %393 = vmatmul.f32.gmra.mxu0 %v321
        %v394 = vpop.f32.mrf.mxu0
        %v395 = vadd.f32 0.0, %v394
        %396 = vmatmul.f32.gmra.mxu0 %v322
        %v397 = vpop.f32.mrf.mxu0
        %v398 = vadd.f32 0.0, %v397
        %399 = vmatmul.f32.gmra.mxu0 %v323
        %v400 = vpop.f32.mrf.mxu0
        %v401 = vadd.f32 0.0, %v400
        %402 = vmatmul.f32.gmra.mxu0 %v324
        %v403 = vpop.f32.mrf.mxu0
        %v404 = vadd.f32 0.0, %v403
        %405 = vdwg.mxu0
        %v406 = vld [vmem:[#allocation8] sm:$0x1]
        %v407 = vperm.slane %v406, 0
        %408 = vmatpush.msra.mxu0 %v404
        %409 = vmatpush.msra.mxu0 %v401
        %410 = vmatpush.msra.mxu0 %v398
        %411 = vmatpush.msra.mxu0 %v395
        %412 = vmatpush.msra.mxu0 %v392
        %413 = vmatpush.msra.mxu0 %v389
        %414 = vmatpush.msra.mxu0 %v386
        %415 = vmatpush.msra.mxu0 %v383
        %416 = vmatpush.msra.mxu0 %v380
        %417 = vmatpush.msra.mxu0 %v377
        %418 = vmatpush.msra.mxu0 %v374
        %419 = vmatpush.msra.mxu0 %v371
        %420 = vmatpush.msra.mxu0 %v368
        %421 = vmatpush.msra.mxu0 %v365
        %422 = vmatpush.msra.mxu0 %v362
        %423 = vmatpush.msra.mxu0 %v359
        %424 = vmatmul.f32.gmra.mxu0 %v293
        %v425 = vpop.f32.mrf.mxu0
        %v426 = vadd.f32 %v407, %v425
        %427 = vmatmul.f32.gmra.mxu0 %v294
        %v428 = vpop.f32.mrf.mxu0
        %v429 = vadd.f32 %v407, %v428
        %430 = vmatmul.f32.gmra.mxu0 %v295
        %v431 = vpop.f32.mrf.mxu0
        %v432 = vadd.f32 %v407, %v431
        %433 = vmatmul.f32.gmra.mxu0 %v296
        %v434 = vpop.f32.mrf.mxu0
        %v435 = vadd.f32 %v407, %v434
        %436 = vmatmul.f32.gmra.mxu0 %v297
        %v437 = vpop.f32.mrf.mxu0
        %v438 = vadd.f32 %v407, %v437
        %439 = vmatmul.f32.gmra.mxu0 %v298
        %v440 = vpop.f32.mrf.mxu0
        %v441 = vadd.f32 %v407, %v440
        %442 = vmatmul.f32.gmra.mxu0 %v299
        %v443 = vpop.f32.mrf.mxu0
        %v444 = vadd.f32 %v407, %v443
        %445 = vmatmul.f32.gmra.mxu0 %v300
        %v446 = vpop.f32.mrf.mxu0
        %v447 = vadd.f32 %v407, %v446
        %448 = vmatmul.f32.gmra.mxu0 %v301
        %v449 = vpop.f32.mrf.mxu0
        %v450 = vadd.f32 %v407, %v449
        %451 = vmatmul.f32.gmra.mxu0 %v302
        %v452 = vpop.f32.mrf.mxu0
        %v453 = vadd.f32 %v407, %v452
        %454 = vmatmul.f32.gmra.mxu0 %v303
        %v455 = vpop.f32.mrf.mxu0
        %v456 = vadd.f32 %v407, %v455
        %457 = vmatmul.f32.gmra.mxu0 %v304
        %v458 = vpop.f32.mrf.mxu0
        %v459 = vadd.f32 %v407, %v458
        %460 = vmatmul.f32.gmra.mxu0 %v305
        %v461 = vpop.f32.mrf.mxu0
        %v462 = vadd.f32 %v407, %v461
        %463 = vmatmul.f32.gmra.mxu0 %v306
        %v464 = vpop.f32.mrf.mxu0
        %v465 = vadd.f32 %v407, %v464
        %466 = vmatmul.f32.gmra.mxu0 %v307
        %v467 = vpop.f32.mrf.mxu0
        %v468 = vadd.f32 %v407, %v467
        %469 = vmatmul.f32.gmra.mxu0 %v308
        %v470 = vpop.f32.mrf.mxu0
        %v471 = vadd.f32 %v407, %v470
        %472 = vdwg.mxu0
        %v473 = vmax.f32 %v426, 0.0
        %v474 = vmax.f32 %v429, 0.0
        %v475 = vmax.f32 %v432, 0.0
        %v476 = vmax.f32 %v435, 0.0
        %v477 = vmax.f32 %v438, 0.0
        %v478 = vmax.f32 %v441, 0.0
        %v479 = vmax.f32 %v444, 0.0
        %v480 = vmax.f32 %v447, 0.0
        %v481 = vmax.f32 %v450, 0.0
        %v482 = vmax.f32 %v453, 0.0
        %v483 = vmax.f32 %v456, 0.0
        %v484 = vmax.f32 %v459, 0.0
        %v485 = vmax.f32 %v462, 0.0
        %v486 = vmax.f32 %v465, 0.0
        %v487 = vmax.f32 %v468, 0.0
        %v488 = vmax.f32 %v471, 0.0
        %s489 = scalar_lea.vmem [#allocation7], 128
        %v490 = vld [vmem:[%s489] sm:$0xff]
        %v491 = vld [vmem:[%s489 + $0x8] sm:$0xff]
        %v492 = vld [vmem:[%s489 + $0x10] sm:$0xff]
        %v493 = vld [vmem:[%s489 + $0x18] sm:$0xff]
        %v494 = vld [vmem:[%s489 + $0x20] sm:$0xff]
        %v495 = vld [vmem:[%s489 + $0x28] sm:$0xff]
        %v496 = vld [vmem:[%s489 + $0x30] sm:$0xff]
        %v497 = vld [vmem:[%s489 + $0x38] sm:$0xff]
        %v498 = vld [vmem:[%s489 + $0x40] sm:$0xff]
        %v499 = vld [vmem:[%s489 + $0x48] sm:$0xff]
        %v500 = vld [vmem:[%s489 + $0x50] sm:$0xff]
        %v501 = vld [vmem:[%s489 + $0x58] sm:$0xff]
        %v502 = vld [vmem:[%s489 + $0x60] sm:$0xff]
        %v503 = vld [vmem:[%s489 + $0x68] sm:$0xff]
        %v504 = vld [vmem:[%s489 + $0x70] sm:$0xff]
        %v505 = vld [vmem:[%s489 + $0x78] sm:$0xff]
        %506 = vmatpush.msra.mxu0 %v505
        %507 = vmatpush.msra.mxu0 %v504
        %508 = vmatpush.msra.mxu0 %v503
        %509 = vmatpush.msra.mxu0 %v502
        %510 = vmatpush.msra.mxu0 %v501
        %511 = vmatpush.msra.mxu0 %v500
        %512 = vmatpush.msra.mxu0 %v499
        %513 = vmatpush.msra.mxu0 %v498
        %514 = vmatpush.msra.mxu0 %v497
        %515 = vmatpush.msra.mxu0 %v496
        %516 = vmatpush.msra.mxu0 %v495
        %517 = vmatpush.msra.mxu0 %v494
        %518 = vmatpush.msra.mxu0 %v493
        %519 = vmatpush.msra.mxu0 %v492
        %520 = vmatpush.msra.mxu0 %v491
        %521 = vmatpush.msra.mxu0 %v490
        %522 = vmatmul.f32.gmra.mxu0 %v473
        %v523 = vpop.f32.mrf.mxu0
        %v524 = vadd.f32 0.0, %v523
        %525 = vmatmul.f32.gmra.mxu0 %v474
        %v526 = vpop.f32.mrf.mxu0
        %v527 = vadd.f32 0.0, %v526
        %528 = vmatmul.f32.gmra.mxu0 %v475
        %v529 = vpop.f32.mrf.mxu0
        %v530 = vadd.f32 0.0, %v529
        %531 = vmatmul.f32.gmra.mxu0 %v476
        %v532 = vpop.f32.mrf.mxu0
        %v533 = vadd.f32 0.0, %v532
        %534 = vmatmul.f32.gmra.mxu0 %v477
        %v535 = vpop.f32.mrf.mxu0
        %v536 = vadd.f32 0.0, %v535
        %537 = vmatmul.f32.gmra.mxu0 %v478
        %v538 = vpop.f32.mrf.mxu0
        %v539 = vadd.f32 0.0, %v538
        %540 = vmatmul.f32.gmra.mxu0 %v479
        %v541 = vpop.f32.mrf.mxu0
        %v542 = vadd.f32 0.0, %v541
        %543 = vmatmul.f32.gmra.mxu0 %v480
        %v544 = vpop.f32.mrf.mxu0
        %v545 = vadd.f32 0.0, %v544
        %546 = vmatmul.f32.gmra.mxu0 %v481
        %v547 = vpop.f32.mrf.mxu0
        %v548 = vadd.f32 0.0, %v547
        %549 = vmatmul.f32.gmra.mxu0 %v482
        %v550 = vpop.f32.mrf.mxu0
        %v551 = vadd.f32 0.0, %v550
        %552 = vmatmul.f32.gmra.mxu0 %v483
        %v553 = vpop.f32.mrf.mxu0
        %v554 = vadd.f32 0.0, %v553
        %555 = vmatmul.f32.gmra.mxu0 %v484
        %v556 = vpop.f32.mrf.mxu0
        %v557 = vadd.f32 0.0, %v556
        %558 = vmatmul.f32.gmra.mxu0 %v485
        %v559 = vpop.f32.mrf.mxu0
        %v560 = vadd.f32 0.0, %v559
        %561 = vmatmul.f32.gmra.mxu0 %v486
        %v562 = vpop.f32.mrf.mxu0
        %v563 = vadd.f32 0.0, %v562
        %564 = vmatmul.f32.gmra.mxu0 %v487
        %v565 = vpop.f32.mrf.mxu0
        %v566 = vadd.f32 0.0, %v565
        %567 = vmatmul.f32.gmra.mxu0 %v488
        %v568 = vpop.f32.mrf.mxu0
        %v569 = vadd.f32 0.0, %v568
        %570 = vdwg.mxu0
        %v571 = vld [vmem:[#allocation8 + $0x1] sm:$0x1]
        %v572 = vperm.slane %v571, 0
        %573 = vmatpush.msra.mxu0 %v569
        %574 = vmatpush.msra.mxu0 %v566
        %575 = vmatpush.msra.mxu0 %v563
        %576 = vmatpush.msra.mxu0 %v560
        %577 = vmatpush.msra.mxu0 %v557
        %578 = vmatpush.msra.mxu0 %v554
        %579 = vmatpush.msra.mxu0 %v551
        %580 = vmatpush.msra.mxu0 %v548
        %581 = vmatpush.msra.mxu0 %v545
        %582 = vmatpush.msra.mxu0 %v542
        %583 = vmatpush.msra.mxu0 %v539
        %584 = vmatpush.msra.mxu0 %v536
        %585 = vmatpush.msra.mxu0 %v533
        %586 = vmatpush.msra.mxu0 %v530
        %587 = vmatpush.msra.mxu0 %v527
        %588 = vmatpush.msra.mxu0 %v524
        %589 = vmatmul.f32.gmra.mxu0 %v293
        %v590 = vpop.f32.mrf.mxu0
        %v591 = vadd.f32 %v572, %v590
        %592 = vmatmul.f32.gmra.mxu0 %v294
        %v593 = vpop.f32.mrf.mxu0
        %v594 = vadd.f32 %v572, %v593
        %595 = vmatmul.f32.gmra.mxu0 %v295
        %v596 = vpop.f32.mrf.mxu0
        %v597 = vadd.f32 %v572, %v596
        %598 = vmatmul.f32.gmra.mxu0 %v296
        %v599 = vpop.f32.mrf.mxu0
        %v600 = vadd.f32 %v572, %v599
        %601 = vmatmul.f32.gmra.mxu0 %v297
        %v602 = vpop.f32.mrf.mxu0
        %v603 = vadd.f32 %v572, %v602
        %604 = vmatmul.f32.gmra.mxu0 %v298
        %v605 = vpop.f32.mrf.mxu0
        %v606 = vadd.f32 %v572, %v605
        %607 = vmatmul.f32.gmra.mxu0 %v299
        %v608 = vpop.f32.mrf.mxu0
        %v609 = vadd.f32 %v572, %v608
        %610 = vmatmul.f32.gmra.mxu0 %v300
        %v611 = vpop.f32.mrf.mxu0
        %v612 = vadd.f32 %v572, %v611
        %613 = vmatmul.f32.gmra.mxu0 %v301
        %v614 = vpop.f32.mrf.mxu0
        %v615 = vadd.f32 %v572, %v614
        %616 = vmatmul.f32.gmra.mxu0 %v302
        %v617 = vpop.f32.mrf.mxu0
        %v618 = vadd.f32 %v572, %v617
        %619 = vmatmul.f32.gmra.mxu0 %v303
        %v620 = vpop.f32.mrf.mxu0
        %v621 = vadd.f32 %v572, %v620
        %622 = vmatmul.f32.gmra.mxu0 %v304
        %v623 = vpop.f32.mrf.mxu0
        %v624 = vadd.f32 %v572, %v623
        %625 = vmatmul.f32.gmra.mxu0 %v305
        %v626 = vpop.f32.mrf.mxu0
        %v627 = vadd.f32 %v572, %v626
        %628 = vmatmul.f32.gmra.mxu0 %v306
        %v629 = vpop.f32.mrf.mxu0
        %v630 = vadd.f32 %v572, %v629
        %631 = vmatmul.f32.gmra.mxu0 %v307
        %v632 = vpop.f32.mrf.mxu0
        %v633 = vadd.f32 %v572, %v632
        %634 = vmatmul.f32.gmra.mxu0 %v308
        %v635 = vpop.f32.mrf.mxu0
        %v636 = vadd.f32 %v572, %v635
        %637 = vdwg.mxu0
        %v638 = vmax.f32 %v591, 0.0
        %v639 = vmax.f32 %v594, 0.0
        %v640 = vmax.f32 %v597, 0.0
        %v641 = vmax.f32 %v600, 0.0
        %v642 = vmax.f32 %v603, 0.0
        %v643 = vmax.f32 %v606, 0.0
        %v644 = vmax.f32 %v609, 0.0
        %v645 = vmax.f32 %v612, 0.0
        %v646 = vmax.f32 %v615, 0.0
        %v647 = vmax.f32 %v618, 0.0
        %v648 = vmax.f32 %v621, 0.0
        %v649 = vmax.f32 %v624, 0.0
        %v650 = vmax.f32 %v627, 0.0
        %v651 = vmax.f32 %v630, 0.0
        %v652 = vmax.f32 %v633, 0.0
        %v653 = vmax.f32 %v636, 0.0
        %s654 = scalar_lea.vmem [#allocation7], 256
        %v655 = vld [vmem:[%s654] sm:$0xff]
        %v656 = vld [vmem:[%s654 + $0x8] sm:$0xff]
        %v657 = vld [vmem:[%s654 + $0x10] sm:$0xff]
        %v658 = vld [vmem:[%s654 + $0x18] sm:$0xff]
        %v659 = vld [vmem:[%s654 + $0x20] sm:$0xff]
        %v660 = vld [vmem:[%s654 + $0x28] sm:$0xff]
        %v661 = vld [vmem:[%s654 + $0x30] sm:$0xff]
        %v662 = vld [vmem:[%s654 + $0x38] sm:$0xff]
        %v663 = vld [vmem:[%s654 + $0x40] sm:$0xff]
        %v664 = vld [vmem:[%s654 + $0x48] sm:$0xff]
        %v665 = vld [vmem:[%s654 + $0x50] sm:$0xff]
        %v666 = vld [vmem:[%s654 + $0x58] sm:$0xff]
        %v667 = vld [vmem:[%s654 + $0x60] sm:$0xff]
        %v668 = vld [vmem:[%s654 + $0x68] sm:$0xff]
        %v669 = vld [vmem:[%s654 + $0x70] sm:$0xff]
        %v670 = vld [vmem:[%s654 + $0x78] sm:$0xff]
        %671 = vmatpush.msra.mxu0 %v670
        %672 = vmatpush.msra.mxu0 %v669
        %673 = vmatpush.msra.mxu0 %v668
        %674 = vmatpush.msra.mxu0 %v667
        %675 = vmatpush.msra.mxu0 %v666
        %676 = vmatpush.msra.mxu0 %v665
        %677 = vmatpush.msra.mxu0 %v664
        %678 = vmatpush.msra.mxu0 %v663
        %679 = vmatpush.msra.mxu0 %v662
        %680 = vmatpush.msra.mxu0 %v661
        %681 = vmatpush.msra.mxu0 %v660
        %682 = vmatpush.msra.mxu0 %v659
        %683 = vmatpush.msra.mxu0 %v658
        %684 = vmatpush.msra.mxu0 %v657
        %685 = vmatpush.msra.mxu0 %v656
        %686 = vmatpush.msra.mxu0 %v655
        %687 = vmatmul.f32.gmra.mxu0 %v638
        %v688 = vpop.f32.mrf.mxu0
        %v689 = vadd.f32 0.0, %v688
        %690 = vmatmul.f32.gmra.mxu0 %v639
        %v691 = vpop.f32.mrf.mxu0
        %v692 = vadd.f32 0.0, %v691
        %693 = vmatmul.f32.gmra.mxu0 %v640
        %v694 = vpop.f32.mrf.mxu0
        %v695 = vadd.f32 0.0, %v694
        %696 = vmatmul.f32.gmra.mxu0 %v641
        %v697 = vpop.f32.mrf.mxu0
        %v698 = vadd.f32 0.0, %v697
        %699 = vmatmul.f32.gmra.mxu0 %v642
        %v700 = vpop.f32.mrf.mxu0
        %v701 = vadd.f32 0.0, %v700
        %702 = vmatmul.f32.gmra.mxu0 %v643
        %v703 = vpop.f32.mrf.mxu0
        %v704 = vadd.f32 0.0, %v703
        %705 = vmatmul.f32.gmra.mxu0 %v644
        %v706 = vpop.f32.mrf.mxu0
        %v707 = vadd.f32 0.0, %v706
        %708 = vmatmul.f32.gmra.mxu0 %v645
        %v709 = vpop.f32.mrf.mxu0
        %v710 = vadd.f32 0.0, %v709
        %711 = vmatmul.f32.gmra.mxu0 %v646
        %v712 = vpop.f32.mrf.mxu0
        %v713 = vadd.f32 0.0, %v712
        %714 = vmatmul.f32.gmra.mxu0 %v647
        %v715 = vpop.f32.mrf.mxu0
        %v716 = vadd.f32 0.0, %v715
        %717 = vmatmul.f32.gmra.mxu0 %v648
        %v718 = vpop.f32.mrf.mxu0
        %v719 = vadd.f32 0.0, %v718
        %720 = vmatmul.f32.gmra.mxu0 %v649
        %v721 = vpop.f32.mrf.mxu0
        %v722 = vadd.f32 0.0, %v721
        %723 = vmatmul.f32.gmra.mxu0 %v650
        %v724 = vpop.f32.mrf.mxu0
        %v725 = vadd.f32 0.0, %v724
        %726 = vmatmul.f32.gmra.mxu0 %v651
        %v727 = vpop.f32.mrf.mxu0
        %v728 = vadd.f32 0.0, %v727
        %729 = vmatmul.f32.gmra.mxu0 %v652
        %v730 = vpop.f32.mrf.mxu0
        %v731 = vadd.f32 0.0, %v730
        %732 = vmatmul.f32.gmra.mxu0 %v653
        %v733 = vpop.f32.mrf.mxu0
        %v734 = vadd.f32 0.0, %v733
        %735 = vdwg.mxu0
        %v736 = vld [vmem:[#allocation8 + $0x2] sm:$0x1]
        %v737 = vperm.slane %v736, 0
        %738 = vmatpush.msra.mxu0 %v734
        %739 = vmatpush.msra.mxu0 %v731
        %740 = vmatpush.msra.mxu0 %v728
        %741 = vmatpush.msra.mxu0 %v725
        %742 = vmatpush.msra.mxu0 %v722
        %743 = vmatpush.msra.mxu0 %v719
        %744 = vmatpush.msra.mxu0 %v716
        %745 = vmatpush.msra.mxu0 %v713
        %746 = vmatpush.msra.mxu0 %v710
        %747 = vmatpush.msra.mxu0 %v707
        %748 = vmatpush.msra.mxu0 %v704
        %749 = vmatpush.msra.mxu0 %v701
        %750 = vmatpush.msra.mxu0 %v698
        %751 = vmatpush.msra.mxu0 %v695
        %752 = vmatpush.msra.mxu0 %v692
        %753 = vmatpush.msra.mxu0 %v689
        %754 = vmatmul.f32.gmra.mxu0 %v293
        %v755 = vpop.f32.mrf.mxu0
        %v756 = vadd.f32 %v737, %v755
        %757 = vmatmul.f32.gmra.mxu0 %v294
        %v758 = vpop.f32.mrf.mxu0
        %v759 = vadd.f32 %v737, %v758
        %760 = vmatmul.f32.gmra.mxu0 %v295
        %v761 = vpop.f32.mrf.mxu0
        %v762 = vadd.f32 %v737, %v761
        %763 = vmatmul.f32.gmra.mxu0 %v296
        %v764 = vpop.f32.mrf.mxu0
        %v765 = vadd.f32 %v737, %v764
        %766 = vmatmul.f32.gmra.mxu0 %v297
        %v767 = vpop.f32.mrf.mxu0
        %v768 = vadd.f32 %v737, %v767
        %769 = vmatmul.f32.gmra.mxu0 %v298
        %v770 = vpop.f32.mrf.mxu0
        %v771 = vadd.f32 %v737, %v770
        %772 = vmatmul.f32.gmra.mxu0 %v299
        %v773 = vpop.f32.mrf.mxu0
        %v774 = vadd.f32 %v737, %v773
        %775 = vmatmul.f32.gmra.mxu0 %v300
        %v776 = vpop.f32.mrf.mxu0
        %v777 = vadd.f32 %v737, %v776
        %778 = vmatmul.f32.gmra.mxu0 %v301
        %v779 = vpop.f32.mrf.mxu0
        %v780 = vadd.f32 %v737, %v779
        %781 = vmatmul.f32.gmra.mxu0 %v302
        %v782 = vpop.f32.mrf.mxu0
        %v783 = vadd.f32 %v737, %v782
        %784 = vmatmul.f32.gmra.mxu0 %v303
        %v785 = vpop.f32.mrf.mxu0
        %v786 = vadd.f32 %v737, %v785
        %787 = vmatmul.f32.gmra.mxu0 %v304
        %v788 = vpop.f32.mrf.mxu0
        %v789 = vadd.f32 %v737, %v788
        %790 = vmatmul.f32.gmra.mxu0 %v305
        %v791 = vpop.f32.mrf.mxu0
        %v792 = vadd.f32 %v737, %v791
        %793 = vmatmul.f32.gmra.mxu0 %v306
        %v794 = vpop.f32.mrf.mxu0
        %v795 = vadd.f32 %v737, %v794
        %796 = vmatmul.f32.gmra.mxu0 %v307
        %v797 = vpop.f32.mrf.mxu0
        %v798 = vadd.f32 %v737, %v797
        %799 = vmatmul.f32.gmra.mxu0 %v308
        %v800 = vpop.f32.mrf.mxu0
        %v801 = vadd.f32 %v737, %v800
        %802 = vdwg.mxu0
        %v803 = vmax.f32 %v756, 0.0
        %v804 = vmax.f32 %v759, 0.0
        %v805 = vmax.f32 %v762, 0.0
        %v806 = vmax.f32 %v765, 0.0
        %v807 = vmax.f32 %v768, 0.0
        %v808 = vmax.f32 %v771, 0.0
        %v809 = vmax.f32 %v774, 0.0
        %v810 = vmax.f32 %v777, 0.0
        %v811 = vmax.f32 %v780, 0.0
        %v812 = vmax.f32 %v783, 0.0
        %v813 = vmax.f32 %v786, 0.0
        %v814 = vmax.f32 %v789, 0.0
        %v815 = vmax.f32 %v792, 0.0
        %v816 = vmax.f32 %v795, 0.0
        %v817 = vmax.f32 %v798, 0.0
        %v818 = vmax.f32 %v801, 0.0
        %v819 = vlaneseq
        %v820 = vand.u32 %v819, 127
        %v821 = vlaneseq
        %v822 = vshrl.u32 %v821, 7
        %v823 = vmul.u32 %v822, 16
        %vm824 = vcmp.ge.s32.totalorder %v820, %v823
        %v825 = vadd.s32 %v822, 1
        %v826 = vmul.u32 %v825, 16
        %vm827 = vcmp.lt.s32.totalorder %v820, %v826
        %vm828 = vmand %vm824, %vm827
        %v829 = vsel %vm828, 1, 0
        %v830 = vcvt.s32.f32 %v829
        %v831 = vadd.s32 %v822, 8
        %v832 = vadd.s32 %v822, 16
        %v833 = vadd.s32 %v822, 24
        %v834 = vadd.s32 %v822, 32
        %v835 = vadd.s32 %v822, 40
        %v836 = vadd.s32 %v822, 48
        %v837 = vadd.s32 %v822, 56
        %v838 = vadd.s32 %v822, 64
        %v839 = vadd.s32 %v822, 72
        %v840 = vadd.s32 %v822, 80
        %v841 = vadd.s32 %v822, 88
        %v842 = vadd.s32 %v822, 96
        %v843 = vadd.s32 %v822, 104
        %v844 = vadd.s32 %v822, 112
        %v845 = vadd.s32 %v822, 120
        %v846 = vmul.u32 %v820, 16
        %vm847 = vcmp.ge.s32.totalorder %v822, %v846
        %vm848 = vcmp.ge.s32.totalorder %v831, %v846
        %vm849 = vcmp.ge.s32.totalorder %v832, %v846
        %vm850 = vcmp.ge.s32.totalorder %v833, %v846
        %vm851 = vcmp.ge.s32.totalorder %v834, %v846
        %vm852 = vcmp.ge.s32.totalorder %v835, %v846
        %vm853 = vcmp.ge.s32.totalorder %v836, %v846
        %vm854 = vcmp.ge.s32.totalorder %v837, %v846
        %vm855 = vcmp.ge.s32.totalorder %v838, %v846
        %vm856 = vcmp.ge.s32.totalorder %v839, %v846
        %vm857 = vcmp.ge.s32.totalorder %v840, %v846
        %vm858 = vcmp.ge.s32.totalorder %v841, %v846
        %vm859 = vcmp.ge.s32.totalorder %v842, %v846
        %vm860 = vcmp.ge.s32.totalorder %v843, %v846
        %vm861 = vcmp.ge.s32.totalorder %v844, %v846
        %vm862 = vcmp.ge.s32.totalorder %v845, %v846
        %v863 = vadd.s32 %v820, 1
        %v864 = vmul.u32 %v863, 16
        %vm865 = vcmp.lt.s32.totalorder %v822, %v864
        %vm866 = vcmp.lt.s32.totalorder %v831, %v864
        %vm867 = vcmp.lt.s32.totalorder %v832, %v864
        %vm868 = vcmp.lt.s32.totalorder %v833, %v864
        %vm869 = vcmp.lt.s32.totalorder %v834, %v864
        %vm870 = vcmp.lt.s32.totalorder %v835, %v864
        %vm871 = vcmp.lt.s32.totalorder %v836, %v864
        %vm872 = vcmp.lt.s32.totalorder %v837, %v864
        %vm873 = vcmp.lt.s32.totalorder %v838, %v864
        %vm874 = vcmp.lt.s32.totalorder %v839, %v864
        %vm875 = vcmp.lt.s32.totalorder %v840, %v864
        %vm876 = vcmp.lt.s32.totalorder %v841, %v864
        %vm877 = vcmp.lt.s32.totalorder %v842, %v864
        %vm878 = vcmp.lt.s32.totalorder %v843, %v864
        %vm879 = vcmp.lt.s32.totalorder %v844, %v864
        %vm880 = vcmp.lt.s32.totalorder %v845, %v864
        %vm881 = vmand %vm847, %vm865
        %vm882 = vmand %vm848, %vm866
        %vm883 = vmand %vm849, %vm867
        %vm884 = vmand %vm850, %vm868
        %vm885 = vmand %vm851, %vm869
        %vm886 = vmand %vm852, %vm870
        %vm887 = vmand %vm853, %vm871
        %vm888 = vmand %vm854, %vm872
        %vm889 = vmand %vm855, %vm873
        %vm890 = vmand %vm856, %vm874
        %vm891 = vmand %vm857, %vm875
        %vm892 = vmand %vm858, %vm876
        %vm893 = vmand %vm859, %vm877
        %vm894 = vmand %vm860, %vm878
        %vm895 = vmand %vm861, %vm879
        %vm896 = vmand %vm862, %vm880
        %v897 = vsel %vm881, 1, 0
        %v898 = vsel %vm882, 1, 0
        %v899 = vsel %vm883, 1, 0
        %v900 = vsel %vm884, 1, 0
        %v901 = vsel %vm885, 1, 0
        %v902 = vsel %vm886, 1, 0
        %v903 = vsel %vm887, 1, 0
        %v904 = vsel %vm888, 1, 0
        %v905 = vsel %vm889, 1, 0
        %v906 = vsel %vm890, 1, 0
        %v907 = vsel %vm891, 1, 0
        %v908 = vsel %vm892, 1, 0
        %v909 = vsel %vm893, 1, 0
        %v910 = vsel %vm894, 1, 0
        %v911 = vsel %vm895, 1, 0
        %v912 = vsel %vm896, 1, 0
        %v913 = vcvt.s32.f32 %v897
        %v914 = vcvt.s32.f32 %v898
        %v915 = vcvt.s32.f32 %v899
        %v916 = vcvt.s32.f32 %v900
        %v917 = vcvt.s32.f32 %v901
        %v918 = vcvt.s32.f32 %v902
        %v919 = vcvt.s32.f32 %v903
        %v920 = vcvt.s32.f32 %v904
        %v921 = vcvt.s32.f32 %v905
        %v922 = vcvt.s32.f32 %v906
        %v923 = vcvt.s32.f32 %v907
        %v924 = vcvt.s32.f32 %v908
        %v925 = vcvt.s32.f32 %v909
        %v926 = vcvt.s32.f32 %v910
        %v927 = vcvt.s32.f32 %v911
        %v928 = vcvt.s32.f32 %v912
        %s929 = scalar_lea.vmem [#allocation7], 384
        %v930 = vld [vmem:[%s929] sm:$0xff]
        %v931 = vld [vmem:[%s929 + $0x8] sm:$0xff]
        %v932 = vld [vmem:[%s929 + $0x10] sm:$0xff]
        %v933 = vld [vmem:[%s929 + $0x18] sm:$0xff]
        %v934 = vld [vmem:[%s929 + $0x20] sm:$0xff]
        %v935 = vld [vmem:[%s929 + $0x28] sm:$0xff]
        %v936 = vld [vmem:[%s929 + $0x30] sm:$0xff]
        %v937 = vld [vmem:[%s929 + $0x38] sm:$0xff]
        %v938 = vld [vmem:[%s929 + $0x40] sm:$0xff]
        %v939 = vld [vmem:[%s929 + $0x48] sm:$0xff]
        %v940 = vld [vmem:[%s929 + $0x50] sm:$0xff]
        %v941 = vld [vmem:[%s929 + $0x58] sm:$0xff]
        %v942 = vld [vmem:[%s929 + $0x60] sm:$0xff]
        %v943 = vld [vmem:[%s929 + $0x68] sm:$0xff]
        %v944 = vld [vmem:[%s929 + $0x70] sm:$0xff]
        %v945 = vld [vmem:[%s929 + $0x78] sm:$0xff]
        %946 = vmatpush.msra.mxu0 %v945
        %947 = vmatpush.msra.mxu0 %v944
        %948 = vmatpush.msra.mxu0 %v943
        %949 = vmatpush.msra.mxu0 %v942
        %950 = vmatpush.msra.mxu0 %v941
        %951 = vmatpush.msra.mxu0 %v940
        %952 = vmatpush.msra.mxu0 %v939
        %953 = vmatpush.msra.mxu0 %v938
        %954 = vmatpush.msra.mxu0 %v937
        %955 = vmatpush.msra.mxu0 %v936
        %956 = vmatpush.msra.mxu0 %v935
        %957 = vmatpush.msra.mxu0 %v934
        %958 = vmatpush.msra.mxu0 %v933
        %959 = vmatpush.msra.mxu0 %v932
        %960 = vmatpush.msra.mxu0 %v931
        %961 = vmatpush.msra.mxu0 %v930
        %962 = vmatmul.f32.gmra.mxu0 %v803
        %v963 = vpop.f32.mrf.mxu0
        %v964 = vadd.f32 0.0, %v963
        %965 = vmatmul.f32.gmra.mxu0 %v804
        %v966 = vpop.f32.mrf.mxu0
        %v967 = vadd.f32 0.0, %v966
        %968 = vmatmul.f32.gmra.mxu0 %v805
        %v969 = vpop.f32.mrf.mxu0
        %v970 = vadd.f32 0.0, %v969
        %971 = vmatmul.f32.gmra.mxu0 %v806
        %v972 = vpop.f32.mrf.mxu0
        %v973 = vadd.f32 0.0, %v972
        %974 = vmatmul.f32.gmra.mxu0 %v807
        %v975 = vpop.f32.mrf.mxu0
        %v976 = vadd.f32 0.0, %v975
        %977 = vmatmul.f32.gmra.mxu0 %v808
        %v978 = vpop.f32.mrf.mxu0
        %v979 = vadd.f32 0.0, %v978
        %980 = vmatmul.f32.gmra.mxu0 %v809
        %v981 = vpop.f32.mrf.mxu0
        %v982 = vadd.f32 0.0, %v981
        %983 = vmatmul.f32.gmra.mxu0 %v810
        %v984 = vpop.f32.mrf.mxu0
        %v985 = vadd.f32 0.0, %v984
        %986 = vmatmul.f32.gmra.mxu0 %v811
        %v987 = vpop.f32.mrf.mxu0
        %v988 = vadd.f32 0.0, %v987
        %989 = vmatmul.f32.gmra.mxu0 %v812
        %v990 = vpop.f32.mrf.mxu0
        %v991 = vadd.f32 0.0, %v990
        %992 = vmatmul.f32.gmra.mxu0 %v813
        %v993 = vpop.f32.mrf.mxu0
        %v994 = vadd.f32 0.0, %v993
        %995 = vmatmul.f32.gmra.mxu0 %v814
        %v996 = vpop.f32.mrf.mxu0
        %v997 = vadd.f32 0.0, %v996
        %998 = vmatmul.f32.gmra.mxu0 %v815
        %v999 = vpop.f32.mrf.mxu0
        %v1000 = vadd.f32 0.0, %v999
        %1001 = vmatmul.f32.gmra.mxu0 %v816
        %v1002 = vpop.f32.mrf.mxu0
        %v1003 = vadd.f32 0.0, %v1002
        %1004 = vmatmul.f32.gmra.mxu0 %v817
        %v1005 = vpop.f32.mrf.mxu0
        %v1006 = vadd.f32 0.0, %v1005
        %1007 = vmatmul.f32.gmra.mxu0 %v818
        %v1008 = vpop.f32.mrf.mxu0
        %v1009 = vadd.f32 0.0, %v1008
        %1010 = vdwg.mxu0
        %1011 = vmatpush.msra.mxu0 %v1009
        %1012 = vmatpush.msra.mxu0 %v1006
        %1013 = vmatpush.msra.mxu0 %v1003
        %1014 = vmatpush.msra.mxu0 %v1000
        %1015 = vmatpush.msra.mxu0 %v997
        %1016 = vmatpush.msra.mxu0 %v994
        %1017 = vmatpush.msra.mxu0 %v991
        %1018 = vmatpush.msra.mxu0 %v988
        %1019 = vmatpush.msra.mxu0 %v985
        %1020 = vmatpush.msra.mxu0 %v982
        %1021 = vmatpush.msra.mxu0 %v979
        %1022 = vmatpush.msra.mxu0 %v976
        %1023 = vmatpush.msra.mxu0 %v973
        %1024 = vmatpush.msra.mxu0 %v970
        %1025 = vmatpush.msra.mxu0 %v967
        %1026 = vmatpush.msra.mxu0 %v964
        %1027 = vmatmul.f32.gmra.mxu0 %v830
        %v1028 = vpop.f32.mrf.mxu0
        %v1029 = vadd.f32 0.0, %v1028
        %1030 = vdwg.mxu0
        %v1031 = vmul.f32 %v1029, 0.0625
        %v1032 = vtanh.pop %v1031
        %vm1033 = vcmask 64512
        %v1035 = vsel %vm1033, %v913, 0
        %v1038 = vsel %vm1033, %v914, 0
        %v1041 = vsel %vm1033, %v915, 0
        %v1044 = vsel %vm1033, %v916, 0
        %v1047 = vsel %vm1033, %v917, 0
        %v1050 = vsel %vm1033, %v918, 0
        %v1053 = vsel %vm1033, %v919, 0
        %v1056 = vsel %vm1033, %v920, 0
        %v1059 = vsel %vm1033, %v921, 0
        %v1062 = vsel %vm1033, %v922, 0
        %v1065 = vsel %vm1033, %v923, 0
        %v1068 = vsel %vm1033, %v924, 0
        %v1071 = vsel %vm1033, %v925, 0
        %v1074 = vsel %vm1033, %v926, 0
        %v1077 = vsel %vm1033, %v927, 0
        %v1080 = vsel %vm1033, %v928, 0
        %1082 = vmatpush.msra.mxu0 0.0
        %1083 = vmatpush.msra.mxu0 0.0
        %1084 = vmatpush.msra.mxu0 0.0
        %1085 = vmatpush.msra.mxu0 0.0
        %1086 = vmatpush.msra.mxu0 0.0
        %1087 = vmatpush.msra.mxu0 0.0
        %1088 = vmatpush.msra.mxu0 0.0
        %1089 = vmatpush.msra.mxu0 0.0
        %1090 = vmatpush.msra.mxu0 0.0
        %1091 = vmatpush.msra.mxu0 0.0
        %1092 = vmatpush.msra.mxu0 0.0
        %1093 = vmatpush.msra.mxu0 0.0
        %1094 = vmatpush.msra.mxu0 0.0
        %1095 = vmatpush.msra.mxu0 0.0
        %1096 = vmatpush.msra.mxu0 0.0
        %1097 = vmatpush.msra.mxu0 %v1032
        %1098 = vmatmul.f32.gmra.mxu0 %v1035
        %v1099 = vpop.f32.mrf.mxu0
        %v1100 = vadd.f32 0.0, %v1099
        %1101 = vmatmul.f32.gmra.mxu0 %v1038
        %v1102 = vpop.f32.mrf.mxu0
        %v1103 = vadd.f32 0.0, %v1102
        %1104 = vmatmul.f32.gmra.mxu0 %v1041
        %v1105 = vpop.f32.mrf.mxu0
        %v1106 = vadd.f32 0.0, %v1105
        %1107 = vmatmul.f32.gmra.mxu0 %v1044
        %v1108 = vpop.f32.mrf.mxu0
        %v1109 = vadd.f32 0.0, %v1108
        %1110 = vmatmul.f32.gmra.mxu0 %v1047
        %v1111 = vpop.f32.mrf.mxu0
        %v1112 = vadd.f32 0.0, %v1111
        %1113 = vmatmul.f32.gmra.mxu0 %v1050
        %v1114 = vpop.f32.mrf.mxu0
        %v1115 = vadd.f32 0.0, %v1114
        %1116 = vmatmul.f32.gmra.mxu0 %v1053
        %v1117 = vpop.f32.mrf.mxu0
        %v1118 = vadd.f32 0.0, %v1117
        %1119 = vmatmul.f32.gmra.mxu0 %v1056
        %v1120 = vpop.f32.mrf.mxu0
        %v1121 = vadd.f32 0.0, %v1120
        %1122 = vmatmul.f32.gmra.mxu0 %v1059
        %v1123 = vpop.f32.mrf.mxu0
        %v1124 = vadd.f32 0.0, %v1123
        %1125 = vmatmul.f32.gmra.mxu0 %v1062
        %v1126 = vpop.f32.mrf.mxu0
        %v1127 = vadd.f32 0.0, %v1126
        %1128 = vmatmul.f32.gmra.mxu0 %v1065
        %v1129 = vpop.f32.mrf.mxu0
        %v1130 = vadd.f32 0.0, %v1129
        %1131 = vmatmul.f32.gmra.mxu0 %v1068
        %v1132 = vpop.f32.mrf.mxu0
        %v1133 = vadd.f32 0.0, %v1132
        %1134 = vmatmul.f32.gmra.mxu0 %v1071
        %v1135 = vpop.f32.mrf.mxu0
        %v1136 = vadd.f32 0.0, %v1135
        %1137 = vmatmul.f32.gmra.mxu0 %v1074
        %v1138 = vpop.f32.mrf.mxu0
        %v1139 = vadd.f32 0.0, %v1138
        %1140 = vmatmul.f32.gmra.mxu0 %v1077
        %v1141 = vpop.f32.mrf.mxu0
        %v1142 = vadd.f32 0.0, %v1141
        %1143 = vmatmul.f32.gmra.mxu0 %v1080
        %v1144 = vpop.f32.mrf.mxu0
        %v1145 = vadd.f32 0.0, %v1144
        %1146 = vdwg.mxu0
        %v1147 = vmul.f32 %v803, %v1100
        %v1148 = vmul.f32 %v804, %v1103
        %v1149 = vmul.f32 %v805, %v1106
        %v1150 = vmul.f32 %v806, %v1109
        %v1151 = vmul.f32 %v807, %v1112
        %v1152 = vmul.f32 %v808, %v1115
        %v1153 = vmul.f32 %v809, %v1118
        %v1154 = vmul.f32 %v810, %v1121
        %v1155 = vmul.f32 %v811, %v1124
        %v1156 = vmul.f32 %v812, %v1127
        %v1157 = vmul.f32 %v813, %v1130
        %v1158 = vmul.f32 %v814, %v1133
        %v1159 = vmul.f32 %v815, %v1136
        %v1160 = vmul.f32 %v816, %v1139
        %v1161 = vmul.f32 %v817, %v1142
        %v1162 = vmul.f32 %v818, %v1145
        %1163 = vadd.xlane.f32.xlu0 %v1147
        %v1164 = vpop.xlane.xlu0 %1163
        %1165 = vadd.xlane.f32.xlu0 %v1148
        %v1166 = vpop.xlane.xlu0 %1165
        %1167 = vadd.xlane.f32.xlu0 %v1149
        %v1168 = vpop.xlane.xlu0 %1167
        %1169 = vadd.xlane.f32.xlu0 %v1150
        %v1170 = vpop.xlane.xlu0 %1169
        %1171 = vadd.xlane.f32.xlu0 %v1151
        %v1172 = vpop.xlane.xlu0 %1171
        %1173 = vadd.xlane.f32.xlu0 %v1152
        %v1174 = vpop.xlane.xlu0 %1173
        %1175 = vadd.xlane.f32.xlu0 %v1153
        %v1176 = vpop.xlane.xlu0 %1175
        %1177 = vadd.xlane.f32.xlu0 %v1154
        %v1178 = vpop.xlane.xlu0 %1177
        %1179 = vadd.xlane.f32.xlu0 %v1155
        %v1180 = vpop.xlane.xlu0 %1179
        %1181 = vadd.xlane.f32.xlu0 %v1156
        %v1182 = vpop.xlane.xlu0 %1181
        %1183 = vadd.xlane.f32.xlu0 %v1157
        %v1184 = vpop.xlane.xlu0 %1183
        %1185 = vadd.xlane.f32.xlu0 %v1158
        %v1186 = vpop.xlane.xlu0 %1185
        %1187 = vadd.xlane.f32.xlu0 %v1159
        %v1188 = vpop.xlane.xlu0 %1187
        %1189 = vadd.xlane.f32.xlu0 %v1160
        %v1190 = vpop.xlane.xlu0 %1189
        %1191 = vadd.xlane.f32.xlu0 %v1161
        %v1192 = vpop.xlane.xlu0 %1191
        %1193 = vadd.xlane.f32.xlu0 %v1162
        %v1194 = vpop.xlane.xlu0 %1193
        %v1195 = vxor.u32 %v1164, 2147483648
        %v1196 = vxor.u32 %v1166, 2147483648
        %v1197 = vxor.u32 %v1168, 2147483648
        %v1198 = vxor.u32 %v1170, 2147483648
        %v1199 = vxor.u32 %v1172, 2147483648
        %v1200 = vxor.u32 %v1174, 2147483648
        %v1201 = vxor.u32 %v1176, 2147483648
        %v1202 = vxor.u32 %v1178, 2147483648
        %v1203 = vxor.u32 %v1180, 2147483648
        %v1204 = vxor.u32 %v1182, 2147483648
        %v1205 = vxor.u32 %v1184, 2147483648
        %v1206 = vxor.u32 %v1186, 2147483648
        %v1207 = vxor.u32 %v1188, 2147483648
        %v1208 = vxor.u32 %v1190, 2147483648
        %v1209 = vxor.u32 %v1192, 2147483648
        %v1210 = vxor.u32 %v1194, 2147483648
        %v1211 = vmul.f32 %v1195, 1.442695
        %v1212 = vpow.pop %v1211
        %v1213 = vmul.f32 %v1196, 1.442695
        %v1214 = vpow.pop %v1213
        %v1215 = vmul.f32 %v1197, 1.442695
        %v1216 = vpow.pop %v1215
        %v1217 = vmul.f32 %v1198, 1.442695
        %v1218 = vpow.pop %v1217
        %v1219 = vmul.f32 %v1199, 1.442695
        %v1220 = vpow.pop %v1219
        %v1221 = vmul.f32 %v1200, 1.442695
        %v1222 = vpow.pop %v1221
        %v1223 = vmul.f32 %v1201, 1.442695
        %v1224 = vpow.pop %v1223
        %v1225 = vmul.f32 %v1202, 1.442695
        %v1226 = vpow.pop %v1225
        %v1227 = vmul.f32 %v1203, 1.442695
        %v1228 = vpow.pop %v1227
        %v1229 = vmul.f32 %v1204, 1.442695
        %v1230 = vpow.pop %v1229
        %v1231 = vmul.f32 %v1205, 1.442695
        %v1232 = vpow.pop %v1231
        %v1233 = vmul.f32 %v1206, 1.442695
        %v1234 = vpow.pop %v1233
        %v1235 = vmul.f32 %v1207, 1.442695
        %v1236 = vpow.pop %v1235
        %v1237 = vmul.f32 %v1208, 1.442695
        %v1238 = vpow.pop %v1237
        %v1239 = vmul.f32 %v1209, 1.442695
        %v1240 = vpow.pop %v1239
        %v1241 = vmul.f32 %v1210, 1.442695
        %v1242 = vpow.pop %v1241
        %v1243 = vadd.f32 %v1212, 1.0
        %v1244 = vadd.f32 %v1214, 1.0
        %v1245 = vadd.f32 %v1216, 1.0
        %v1246 = vadd.f32 %v1218, 1.0
        %v1247 = vadd.f32 %v1220, 1.0
        %v1248 = vadd.f32 %v1222, 1.0
        %v1249 = vadd.f32 %v1224, 1.0
        %v1250 = vadd.f32 %v1226, 1.0
        %v1251 = vadd.f32 %v1228, 1.0
        %v1252 = vadd.f32 %v1230, 1.0
        %v1253 = vadd.f32 %v1232, 1.0
        %v1254 = vadd.f32 %v1234, 1.0
        %v1255 = vadd.f32 %v1236, 1.0
        %v1256 = vadd.f32 %v1238, 1.0
        %v1257 = vadd.f32 %v1240, 1.0
        %v1258 = vadd.f32 %v1242, 1.0
        %v1259 = vrcp.pop %v1243
        %v1260 = vmul.f32 %v1243, %v1259
        %v1261 = vsub.f32 1.0, %v1260
        %v1262 = vmul.f32 %v1259, %v1261
        %v1263 = vadd.f32 %v1259, %v1262
        %vm1264 = vweird.f32 %v1243
        %vm1265 = vweird.f32 %v1259
        %vm1266 = vmor %vm1264, %vm1265
        %v1267 = vsel %vm1266, %v1259, %v1263
        %v1268 = vand.u32 2147483647, %v1243
        %vm1269 = vcmp.eq.f32.partialorder %v1268, 8.507059e+37
        %v1270 = vand.u32 %v1243, 2147483648
        %v1271 = vor.u32 1.1754944e-38, %v1270
        %v1272 = vsel %vm1269, %v1271, %v1267
        %v1273 = vmul.f32 1.0, %v1272
        %v1274 = vrcp.pop %v1244
        %v1275 = vmul.f32 %v1244, %v1274
        %v1276 = vsub.f32 1.0, %v1275
        %v1277 = vmul.f32 %v1274, %v1276
        %v1278 = vadd.f32 %v1274, %v1277
        %vm1279 = vweird.f32 %v1244
        %vm1280 = vweird.f32 %v1274
        %vm1281 = vmor %vm1279, %vm1280
        %v1282 = vsel %vm1281, %v1274, %v1278
        %v1283 = vand.u32 2147483647, %v1244
        %vm1284 = vcmp.eq.f32.partialorder %v1283, 8.507059e+37
        %v1285 = vand.u32 %v1244, 2147483648
        %v1286 = vor.u32 1.1754944e-38, %v1285
        %v1287 = vsel %vm1284, %v1286, %v1282
        %v1288 = vmul.f32 1.0, %v1287
        %v1289 = vrcp.pop %v1245
        %v1290 = vmul.f32 %v1245, %v1289
        %v1291 = vsub.f32 1.0, %v1290
        %v1292 = vmul.f32 %v1289, %v1291
        %v1293 = vadd.f32 %v1289, %v1292
        %vm1294 = vweird.f32 %v1245
        %vm1295 = vweird.f32 %v1289
        %vm1296 = vmor %vm1294, %vm1295
        %v1297 = vsel %vm1296, %v1289, %v1293
        %v1298 = vand.u32 2147483647, %v1245
        %vm1299 = vcmp.eq.f32.partialorder %v1298, 8.507059e+37
        %v1300 = vand.u32 %v1245, 2147483648
        %v1301 = vor.u32 1.1754944e-38, %v1300
        %v1302 = vsel %vm1299, %v1301, %v1297
        %v1303 = vmul.f32 1.0, %v1302
        %v1304 = vrcp.pop %v1246
        %v1305 = vmul.f32 %v1246, %v1304
        %v1306 = vsub.f32 1.0, %v1305
        %v1307 = vmul.f32 %v1304, %v1306
        %v1308 = vadd.f32 %v1304, %v1307
        %vm1309 = vweird.f32 %v1246
        %vm1310 = vweird.f32 %v1304
        %vm1311 = vmor %vm1309, %vm1310
        %v1312 = vsel %vm1311, %v1304, %v1308
        %v1313 = vand.u32 2147483647, %v1246
        %vm1314 = vcmp.eq.f32.partialorder %v1313, 8.507059e+37
        %v1315 = vand.u32 %v1246, 2147483648
        %v1316 = vor.u32 1.1754944e-38, %v1315
        %v1317 = vsel %vm1314, %v1316, %v1312
        %v1318 = vmul.f32 1.0, %v1317
        %v1319 = vrcp.pop %v1247
        %v1320 = vmul.f32 %v1247, %v1319
        %v1321 = vsub.f32 1.0, %v1320
        %v1322 = vmul.f32 %v1319, %v1321
        %v1323 = vadd.f32 %v1319, %v1322
        %vm1324 = vweird.f32 %v1247
        %vm1325 = vweird.f32 %v1319
        %vm1326 = vmor %vm1324, %vm1325
        %v1327 = vsel %vm1326, %v1319, %v1323
        %v1328 = vand.u32 2147483647, %v1247
        %vm1329 = vcmp.eq.f32.partialorder %v1328, 8.507059e+37
        %v1330 = vand.u32 %v1247, 2147483648
        %v1331 = vor.u32 1.1754944e-38, %v1330
        %v1332 = vsel %vm1329, %v1331, %v1327
        %v1333 = vmul.f32 1.0, %v1332
        %v1334 = vrcp.pop %v1248
        %v1335 = vmul.f32 %v1248, %v1334
        %v1336 = vsub.f32 1.0, %v1335
        %v1337 = vmul.f32 %v1334, %v1336
        %v1338 = vadd.f32 %v1334, %v1337
        %vm1339 = vweird.f32 %v1248
        %vm1340 = vweird.f32 %v1334
        %vm1341 = vmor %vm1339, %vm1340
        %v1342 = vsel %vm1341, %v1334, %v1338
        %v1343 = vand.u32 2147483647, %v1248
        %vm1344 = vcmp.eq.f32.partialorder %v1343, 8.507059e+37
        %v1345 = vand.u32 %v1248, 2147483648
        %v1346 = vor.u32 1.1754944e-38, %v1345
        %v1347 = vsel %vm1344, %v1346, %v1342
        %v1348 = vmul.f32 1.0, %v1347
        %v1349 = vrcp.pop %v1249
        %v1350 = vmul.f32 %v1249, %v1349
        %v1351 = vsub.f32 1.0, %v1350
        %v1352 = vmul.f32 %v1349, %v1351
        %v1353 = vadd.f32 %v1349, %v1352
        %vm1354 = vweird.f32 %v1249
        %vm1355 = vweird.f32 %v1349
        %vm1356 = vmor %vm1354, %vm1355
        %v1357 = vsel %vm1356, %v1349, %v1353
        %v1358 = vand.u32 2147483647, %v1249
        %vm1359 = vcmp.eq.f32.partialorder %v1358, 8.507059e+37
        %v1360 = vand.u32 %v1249, 2147483648
        %v1361 = vor.u32 1.1754944e-38, %v1360
        %v1362 = vsel %vm1359, %v1361, %v1357
        %v1363 = vmul.f32 1.0, %v1362
        %v1364 = vrcp.pop %v1250
        %v1365 = vmul.f32 %v1250, %v1364
        %v1366 = vsub.f32 1.0, %v1365
        %v1367 = vmul.f32 %v1364, %v1366
        %v1368 = vadd.f32 %v1364, %v1367
        %vm1369 = vweird.f32 %v1250
        %vm1370 = vweird.f32 %v1364
        %vm1371 = vmor %vm1369, %vm1370
        %v1372 = vsel %vm1371, %v1364, %v1368
        %v1373 = vand.u32 2147483647, %v1250
        %vm1374 = vcmp.eq.f32.partialorder %v1373, 8.507059e+37
        %v1375 = vand.u32 %v1250, 2147483648
        %v1376 = vor.u32 1.1754944e-38, %v1375
        %v1377 = vsel %vm1374, %v1376, %v1372
        %v1378 = vmul.f32 1.0, %v1377
        %v1379 = vrcp.pop %v1251
        %v1380 = vmul.f32 %v1251, %v1379
        %v1381 = vsub.f32 1.0, %v1380
        %v1382 = vmul.f32 %v1379, %v1381
        %v1383 = vadd.f32 %v1379, %v1382
        %vm1384 = vweird.f32 %v1251
        %vm1385 = vweird.f32 %v1379
        %vm1386 = vmor %vm1384, %vm1385
        %v1387 = vsel %vm1386, %v1379, %v1383
        %v1388 = vand.u32 2147483647, %v1251
        %vm1389 = vcmp.eq.f32.partialorder %v1388, 8.507059e+37
        %v1390 = vand.u32 %v1251, 2147483648
        %v1391 = vor.u32 1.1754944e-38, %v1390
        %v1392 = vsel %vm1389, %v1391, %v1387
        %v1393 = vmul.f32 1.0, %v1392
        %v1394 = vrcp.pop %v1252
        %v1395 = vmul.f32 %v1252, %v1394
        %v1396 = vsub.f32 1.0, %v1395
        %v1397 = vmul.f32 %v1394, %v1396
        %v1398 = vadd.f32 %v1394, %v1397
        %vm1399 = vweird.f32 %v1252
        %vm1400 = vweird.f32 %v1394
        %vm1401 = vmor %vm1399, %vm1400
        %v1402 = vsel %vm1401, %v1394, %v1398
        %v1403 = vand.u32 2147483647, %v1252
        %vm1404 = vcmp.eq.f32.partialorder %v1403, 8.507059e+37
        %v1405 = vand.u32 %v1252, 2147483648
        %v1406 = vor.u32 1.1754944e-38, %v1405
        %v1407 = vsel %vm1404, %v1406, %v1402
        %v1408 = vmul.f32 1.0, %v1407
        %v1409 = vrcp.pop %v1253
        %v1410 = vmul.f32 %v1253, %v1409
        %v1411 = vsub.f32 1.0, %v1410
        %v1412 = vmul.f32 %v1409, %v1411
        %v1413 = vadd.f32 %v1409, %v1412
        %vm1414 = vweird.f32 %v1253
        %vm1415 = vweird.f32 %v1409
        %vm1416 = vmor %vm1414, %vm1415
        %v1417 = vsel %vm1416, %v1409, %v1413
        %v1418 = vand.u32 2147483647, %v1253
        %vm1419 = vcmp.eq.f32.partialorder %v1418, 8.507059e+37
        %v1420 = vand.u32 %v1253, 2147483648
        %v1421 = vor.u32 1.1754944e-38, %v1420
        %v1422 = vsel %vm1419, %v1421, %v1417
        %v1423 = vmul.f32 1.0, %v1422
        %v1424 = vrcp.pop %v1254
        %v1425 = vmul.f32 %v1254, %v1424
        %v1426 = vsub.f32 1.0, %v1425
        %v1427 = vmul.f32 %v1424, %v1426
        %v1428 = vadd.f32 %v1424, %v1427
        %vm1429 = vweird.f32 %v1254
        %vm1430 = vweird.f32 %v1424
        %vm1431 = vmor %vm1429, %vm1430
        %v1432 = vsel %vm1431, %v1424, %v1428
        %v1433 = vand.u32 2147483647, %v1254
        %vm1434 = vcmp.eq.f32.partialorder %v1433, 8.507059e+37
        %v1435 = vand.u32 %v1254, 2147483648
        %v1436 = vor.u32 1.1754944e-38, %v1435
        %v1437 = vsel %vm1434, %v1436, %v1432
        %v1438 = vmul.f32 1.0, %v1437
        %v1439 = vrcp.pop %v1255
        %v1440 = vmul.f32 %v1255, %v1439
        %v1441 = vsub.f32 1.0, %v1440
        %v1442 = vmul.f32 %v1439, %v1441
        %v1443 = vadd.f32 %v1439, %v1442
        %vm1444 = vweird.f32 %v1255
        %vm1445 = vweird.f32 %v1439
        %vm1446 = vmor %vm1444, %vm1445
        %v1447 = vsel %vm1446, %v1439, %v1443
        %v1448 = vand.u32 2147483647, %v1255
        %vm1449 = vcmp.eq.f32.partialorder %v1448, 8.507059e+37
        %v1450 = vand.u32 %v1255, 2147483648
        %v1451 = vor.u32 1.1754944e-38, %v1450
        %v1452 = vsel %vm1449, %v1451, %v1447
        %v1453 = vmul.f32 1.0, %v1452
        %v1454 = vrcp.pop %v1256
        %v1455 = vmul.f32 %v1256, %v1454
        %v1456 = vsub.f32 1.0, %v1455
        %v1457 = vmul.f32 %v1454, %v1456
        %v1458 = vadd.f32 %v1454, %v1457
        %vm1459 = vweird.f32 %v1256
        %vm1460 = vweird.f32 %v1454
        %vm1461 = vmor %vm1459, %vm1460
        %v1462 = vsel %vm1461, %v1454, %v1458
        %v1463 = vand.u32 2147483647, %v1256
        %vm1464 = vcmp.eq.f32.partialorder %v1463, 8.507059e+37
        %v1465 = vand.u32 %v1256, 2147483648
        %v1466 = vor.u32 1.1754944e-38, %v1465
        %v1467 = vsel %vm1464, %v1466, %v1462
        %v1468 = vmul.f32 1.0, %v1467
        %v1469 = vrcp.pop %v1257
        %v1470 = vmul.f32 %v1257, %v1469
        %v1471 = vsub.f32 1.0, %v1470
        %v1472 = vmul.f32 %v1469, %v1471
        %v1473 = vadd.f32 %v1469, %v1472
        %vm1474 = vweird.f32 %v1257
        %vm1475 = vweird.f32 %v1469
        %vm1476 = vmor %vm1474, %vm1475
        %v1477 = vsel %vm1476, %v1469, %v1473
        %v1478 = vand.u32 2147483647, %v1257
        %vm1479 = vcmp.eq.f32.partialorder %v1478, 8.507059e+37
        %v1480 = vand.u32 %v1257, 2147483648
        %v1481 = vor.u32 1.1754944e-38, %v1480
        %v1482 = vsel %vm1479, %v1481, %v1477
        %v1483 = vmul.f32 1.0, %v1482
        %v1484 = vrcp.pop %v1258
        %v1485 = vmul.f32 %v1258, %v1484
        %v1486 = vsub.f32 1.0, %v1485
        %v1487 = vmul.f32 %v1484, %v1486
        %v1488 = vadd.f32 %v1484, %v1487
        %vm1489 = vweird.f32 %v1258
        %vm1490 = vweird.f32 %v1484
        %vm1491 = vmor %vm1489, %vm1490
        %v1492 = vsel %vm1491, %v1484, %v1488
        %v1493 = vand.u32 2147483647, %v1258
        %vm1494 = vcmp.eq.f32.partialorder %v1493, 8.507059e+37
        %v1495 = vand.u32 %v1258, 2147483648
        %v1496 = vor.u32 1.1754944e-38, %v1495
        %v1497 = vsel %vm1494, %v1496, %v1492
        %v1498 = vmul.f32 1.0, %v1497
        %v1499 = vmul.f32 %v803, %v1273
        %v1500 = vmul.f32 %v804, %v1288
        %v1501 = vmul.f32 %v805, %v1303
        %v1502 = vmul.f32 %v806, %v1318
        %v1503 = vmul.f32 %v807, %v1333
        %v1504 = vmul.f32 %v808, %v1348
        %v1505 = vmul.f32 %v809, %v1363
        %v1506 = vmul.f32 %v810, %v1378
        %v1507 = vmul.f32 %v811, %v1393
        %v1508 = vmul.f32 %v812, %v1408
        %v1509 = vmul.f32 %v813, %v1423
        %v1510 = vmul.f32 %v814, %v1438
        %v1511 = vmul.f32 %v815, %v1453
        %v1512 = vmul.f32 %v816, %v1468
        %v1513 = vmul.f32 %v817, %v1483
        %v1514 = vmul.f32 %v818, %v1498
        %1515 = vmatpush.msra.mxu0 %v1514
        %1516 = vmatpush.msra.mxu0 %v1513
        %1517 = vmatpush.msra.mxu0 %v1512
        %1518 = vmatpush.msra.mxu0 %v1511
        %1519 = vmatpush.msra.mxu0 %v1510
        %1520 = vmatpush.msra.mxu0 %v1509
        %1521 = vmatpush.msra.mxu0 %v1508
        %1522 = vmatpush.msra.mxu0 %v1507
        %1523 = vmatpush.msra.mxu0 %v1506
        %1524 = vmatpush.msra.mxu0 %v1505
        %1525 = vmatpush.msra.mxu0 %v1504
        %1526 = vmatpush.msra.mxu0 %v1503
        %1527 = vmatpush.msra.mxu0 %v1502
        %1528 = vmatpush.msra.mxu0 %v1501
        %1529 = vmatpush.msra.mxu0 %v1500
        %1530 = vmatpush.msra.mxu0 %v1499
        %1531 = vmatmul.f32.gmra.mxu0 %v830
        %v1532 = vpop.f32.mrf.mxu0
        %v1533 = vadd.f32 0.0, %v1532
        %1534 = vdwg.mxu0
        %s1535 = scalar_lea.vmem [#allocation7], 512
        %v1536 = vld [vmem:[%s1535] sm:$0xff]
        %v1537 = vld [vmem:[%s1535 + $0x8] sm:$0xff]
        %v1538 = vld [vmem:[%s1535 + $0x10] sm:$0xff]
        %v1539 = vld [vmem:[%s1535 + $0x18] sm:$0xff]
        %v1540 = vld [vmem:[%s1535 + $0x20] sm:$0xff]
        %v1541 = vld [vmem:[%s1535 + $0x28] sm:$0xff]
        %v1542 = vld [vmem:[%s1535 + $0x30] sm:$0xff]
        %v1543 = vld [vmem:[%s1535 + $0x38] sm:$0xff]
        %v1544 = vld [vmem:[%s1535 + $0x40] sm:$0xff]
        %v1545 = vld [vmem:[%s1535 + $0x48] sm:$0xff]
        %v1546 = vld [vmem:[%s1535 + $0x50] sm:$0xff]
        %v1547 = vld [vmem:[%s1535 + $0x58] sm:$0xff]
        %v1548 = vld [vmem:[%s1535 + $0x60] sm:$0xff]
        %v1549 = vld [vmem:[%s1535 + $0x68] sm:$0xff]
        %v1550 = vld [vmem:[%s1535 + $0x70] sm:$0xff]
        %v1551 = vld [vmem:[%s1535 + $0x78] sm:$0xff]
        %v1552 = vld [vmem:[#allocation8 + $0x3] sm:$0x1]
        %v1553 = vperm.slane %v1552, 0
        %1554 = vmatpush.msra.mxu0 %v1551
        %1555 = vmatpush.msra.mxu0 %v1550
        %1556 = vmatpush.msra.mxu0 %v1549
        %1557 = vmatpush.msra.mxu0 %v1548
        %1558 = vmatpush.msra.mxu0 %v1547
        %1559 = vmatpush.msra.mxu0 %v1546
        %1560 = vmatpush.msra.mxu0 %v1545
        %1561 = vmatpush.msra.mxu0 %v1544
        %1562 = vmatpush.msra.mxu0 %v1543
        %1563 = vmatpush.msra.mxu0 %v1542
        %1564 = vmatpush.msra.mxu0 %v1541
        %1565 = vmatpush.msra.mxu0 %v1540
        %1566 = vmatpush.msra.mxu0 %v1539
        %1567 = vmatpush.msra.mxu0 %v1538
        %1568 = vmatpush.msra.mxu0 %v1537
        %1569 = vmatpush.msra.mxu0 %v1536
        %1570 = vmatmul.f32.gmra.mxu0 %v1533
        %v1571 = vpop.f32.mrf.mxu0
        %v1572 = vadd.f32 %v1553, %v1571
        %1573 = vdwg.mxu0
        %v1574 = vmax.f32 %v1572, 0.0
        %s1575 = scalar_lea.vmem [#allocation7], 640
        %v1576 = vld [vmem:[%s1575] sm:$0xff]
        %v1577 = vld [vmem:[%s1575 + $0x8] sm:$0xff]
        %v1578 = vld [vmem:[%s1575 + $0x10] sm:$0xff]
        %v1579 = vld [vmem:[%s1575 + $0x18] sm:$0xff]
        %v1580 = vld [vmem:[%s1575 + $0x20] sm:$0xff]
        %v1581 = vld [vmem:[%s1575 + $0x28] sm:$0xff]
        %v1582 = vld [vmem:[%s1575 + $0x30] sm:$0xff]
        %v1583 = vld [vmem:[%s1575 + $0x38] sm:$0xff]
        %v1584 = vld [vmem:[%s1575 + $0x40] sm:$0xff]
        %v1585 = vld [vmem:[%s1575 + $0x48] sm:$0xff]
        %v1586 = vld [vmem:[%s1575 + $0x50] sm:$0xff]
        %v1587 = vld [vmem:[%s1575 + $0x58] sm:$0xff]
        %v1588 = vld [vmem:[%s1575 + $0x60] sm:$0xff]
        %v1589 = vld [vmem:[%s1575 + $0x68] sm:$0xff]
        %v1590 = vld [vmem:[%s1575 + $0x70] sm:$0xff]
        %v1591 = vld [vmem:[%s1575 + $0x78] sm:$0xff]
        %v1592 = vld [vmem:[#allocation8 + $0x4] sm:$0x1]
        %v1593 = vperm.slane %v1592, 0
        %1594 = vmatpush.msra.mxu0 %v1591
        %1595 = vmatpush.msra.mxu0 %v1590
        %1596 = vmatpush.msra.mxu0 %v1589
        %1597 = vmatpush.msra.mxu0 %v1588
        %1598 = vmatpush.msra.mxu0 %v1587
        %1599 = vmatpush.msra.mxu0 %v1586
        %1600 = vmatpush.msra.mxu0 %v1585
        %1601 = vmatpush.msra.mxu0 %v1584
        %1602 = vmatpush.msra.mxu0 %v1583
        %1603 = vmatpush.msra.mxu0 %v1582
        %1604 = vmatpush.msra.mxu0 %v1581
        %1605 = vmatpush.msra.mxu0 %v1580
        %1606 = vmatpush.msra.mxu0 %v1579
        %1607 = vmatpush.msra.mxu0 %v1578
        %1608 = vmatpush.msra.mxu0 %v1577
        %1609 = vmatpush.msra.mxu0 %v1576
        %1610 = vmatmul.f32.gmra.mxu0 %v1574
        %v1611 = vpop.f32.mrf.mxu0
        %v1612 = vadd.f32 %v1593, %v1611
        %1613 = vdwg.mxu0
        %vm1614 = vcmp.lt.s32.totalorder %v820, 4
        %v1615 = vsel %vm1614, %v1612, -1e+30
        %1616 = vmax.xlane.f32.xlu0 %v1615
        %v1617 = vpop.xlane.xlu0 %1616
        %v1618 = vsub.f32 %v1615, %v1617
        %v1619 = vmul.f32 %v1618, 1.442695
        %v1620 = vpow.pop %v1619
        %1621 = vadd.xlane.f32.xlu0 %v1620
        %v1622 = vpop.xlane.xlu0 %1621
        %v1623 = vlog2.pop %v1622
        %v1624 = vmul.f32 %v1623, 0.6931472
        %v1625 = vadd.f32 %v1617, %v1624
        %v1626 = vsub.f32 %v1615, %v1625
        %1627 = vst [vmem:[%s290] sm:$0xff] %v1626
        %s1628 = sand.u32 %s127, 1
        %s1629 = scalar_lea.sflag [#allocation4], %s1628
        %s1630 = sand.u32 %s127, 1
        %s1631 = smul.addr %s1630, 8
        %s1632 = scalar_lea.vmem [#allocation10], %s1631
        // Predicated region
        $region53: #{tpu_custom_call.1} parent=35 // pred_check
          %p1633 = pneg %p137
        $region54: #{tpu_custom_call.1} parent=35 // pred_check_branch
          %1635 = sbr.rel (%p1633) target = $region56
        $region55: #{tpu_custom_call.1} parent=35 // pred_region
          %1637 = vsyncadd %s1629, 0
          %s1638 = smul.addr %s25, 8
          %s1639 = scalar_lea.hbm %s4, %s1638
          %s1641 = sshll.u32 %s1632, 4
          %s1642 = int_to_ptr.vmem [resolvable:$true] %s1641
          %s1643 = sshll.u32 %s1639, 4
          %s1644 = int_to_ptr.hbm [resolvable:$true] %s1643
          %1646 = dma.vmem_to_hbm [thread:$0]  %s1642, 128, %s1644, %s1629
        $region56: #{tpu_custom_call.1} parent=35 // pred_fallthru
          _
      $region36: #{tpu_custom_call.1} parent=5 // pred_fallthru
        _
      %p1647 = scmp.le.s32.totalorder 2, %s20
      // Predicated region
      $region57: #{tpu_custom_call.1} parent=5 // pred_check
        %p1648 = pneg %p1647
      $region58: #{tpu_custom_call.1} parent=5 // pred_check_branch
        %1650 = sbr.rel (%p1648) target = $region60
      $region59: #{tpu_custom_call.1} parent=5 // pred_region
        %s1651 = ssub.s32 %s20, 2
        // Predicated region
        $region61: #{tpu_custom_call.1} parent=59 // pred_check
          %p1652 = pneg %p143
        $region62: #{tpu_custom_call.1} parent=59 // pred_check_branch
          %1654 = sbr.rel (%p1652) target = $region64
        $region63: #{tpu_custom_call.1} parent=59 // pred_region
          %s1655 = sand.u32 %s128, 1
          %s1656 = scalar_lea.sflag [#allocation4], %s1655
          %s1657 = sand.u32 %s128, 1
          %s1658 = smul.addr %s1657, 8
          %s1659 = scalar_lea.vmem [#allocation10], %s1658
          %1661 = dma.done %s1656, 128
        $region64: #{tpu_custom_call.1} parent=59 // pred_fallthru
          _
      $region60: #{tpu_custom_call.1} parent=5 // pred_fallthru
        _
    $region6: #{tpu_custom_call.1} parent=1 // loop_footer
      %s24 = sadd.s32 1, %s20
    $region7: #{tpu_custom_call.1} parent=1 // loop_footer_branch
      %19 = sbr.rel target = $region3
    $region8: #{tpu_custom_call.1} parent=1 // loop_exit
      _
    %1662 = vsyncpa [#allocation3], 1
    %s1663 = scalar_lea.sflag [#allocation3], 1
    %1664 = vsyncpa %s1663, 1
    %1665 = vsyncpa [#allocation6], 1
    %s1666 = scalar_lea.sflag [#allocation6], 1
    %1667 = vsyncpa %s1666, 1
    %1668 = vsyncpa [#allocation9], 1
    %1669 = vsyncpa [#allocation4], 1
    %s1670 = scalar_lea.sflag [#allocation4], 1
    %1671 = vsyncpa %s1670, 1

</llo_original>
